<compile_context>
chip_gen: v7x
topology: tpu7x:2x2x1
jax: 0.10.0
libtpu: 0.0.40
codegen_flags: <defaults>
</compile_context>

<pallas_src>
import functools

import jax
import jax.numpy as jnp
from jax import lax
from jax.experimental import pallas as pl
from jax.experimental.pallas import tpu as pltpu

KERNEL_SIZE = 5
STRIDE = 2
PAD = 2


def _round_up(a, b):
    return ((a + b - 1) // b) * b


def _pick_tile(size, max_tile, unit):
    """Largest multiple of `unit` that divides `size` and is <= max_tile."""
    t = min(size, max_tile)
    t = (t // unit) * unit
    while size % t:
        t -= unit
    return t


# ---------------------------------------------------------------------------
# Pallas kernel: tiled GEMM + folded-BN shift + optional ReLU
# ---------------------------------------------------------------------------
def _fused_gemm_kernel(x_ref, w_ref, s_ref, o_ref, acc_ref, *, apply_relu):
    @pl.when(pl.program_id(2) == 0)
    def _init():
        acc_ref[...] = jnp.zeros_like(acc_ref)

    acc_ref[...] += jnp.dot(x_ref[...], w_ref[...],
                            preferred_element_type=jnp.float32)

    @pl.when(pl.program_id(2) == pl.num_programs(2) - 1)
    def _finalize():
        y = acc_ref[...] + s_ref[...]          # conv-bias & BN already folded
        if apply_relu:
            y = jnp.maximum(y, 0.0)
        o_ref[...] = y.astype(o_ref.dtype)


def fused_gemm(x, w_padded, shift, *, apply_relu,
               tm_max=256, tn_max=256, tk_max=512):
    """relu_opt(x @ w + shift) as a tiled, double-buffered Pallas GEMM.

    x:        (M, K)   float32 activations (cast to bf16 for the MXU).
    w_padded: (Kp, Np) bf16, BN-folded and zero-padded to 128-multiples
              (prepared once, outside the forward).
    shift:    (1, N)   float32 folded bias/BN shift (unpadded).
    Returns (M, N) float32.  Zero padding of x rows / w cols / K leaves the
    valid region bit-identical, so we simply slice it back out at the end.
    """
    m, k = x.shape
    kp, np_ = w_padded.shape
    n = shift.shape[1]

    mp = _round_up(m, 16)
    xp = jnp.pad(x.astype(jnp.bfloat16), ((0, mp - m), (0, kp - k)))
    sp = jnp.pad(shift, ((0, 0), (0, np_ - n)))

    tm = _pick_tile(mp, tm_max, 16)
    tn = _pick_tile(np_, tn_max, 128)
    tk = _pick_tile(kp, tk_max, 128)
    grid = (mp // tm, np_ // tn, kp // tk)

    kernel = functools.partial(_fused_gemm_kernel, apply_relu=apply_relu)
    out = pl.pallas_call(
        kernel,
        out_shape=jax.ShapeDtypeStruct((mp, np_), jnp.float32),
        grid=grid,
        in_specs=[
            pl.BlockSpec((tm, tk), lambda i, j, kk: (i, kk)),
            pl.BlockSpec((tk, tn), lambda i, j, kk: (kk, j)),
            pl.BlockSpec((1, tn), lambda i, j, kk: (0, j)),
        ],
        out_specs=pl.BlockSpec((tm, tn), lambda i, j, kk: (i, j)),
        scratch_shapes=[pltpu.VMEM((tm, tn), jnp.float32)],
        compiler_params=pltpu.CompilerParams(
            dimension_semantics=("parallel", "parallel", "arbitrary"),
            vmem_limit_bytes=32 * 1024 * 1024),
    )(xp, w_padded, sp)
    return out[:m, :n]


# ---------------------------------------------------------------------------
# Patch extraction (stays inside the same jit; no NCHW<->NHWC churn)
# ---------------------------------------------------------------------------
def _patches_nhwc(x):
    """x: (N, H, W, C) -> (N, Ho, Wo, C*KH*KW).

    The flattened patch feature is ordered (c, kh, kw) with kw fastest, which
    matches PyTorch's weight.reshape(Cout, Cin*KH*KW) layout.
    """
    return lax.conv_general_dilated_patches(
        x, filter_shape=(KERNEL_SIZE, KERNEL_SIZE),
        window_strides=(STRIDE, STRIDE),
        padding=[(PAD, PAD), (PAD, PAD)],
        dimension_numbers=("NHWC", "HWIO", "NHWC"))


# ---------------------------------------------------------------------------
# Parameter construction (deterministic, in-script) and one-time preparation
# ---------------------------------------------------------------------------
def conv_out_hw(h, w, k=KERNEL_SIZE, s=STRIDE, p=PAD):
    return (h + 2 * p - k) // s + 1, (w + 2 * p - k) // s + 1


def init_params(key, in_size):
    cin0, h, w = in_size
    channels = [cin0, 64, 128, 256]
    eps = 1e-5
    convs = []
    for i in range(3):
        key, kw_key, kb_key = jax.random.split(key, 3)
        cin, cout = channels[i], channels[i + 1]
        fan_in = cin * KERNEL_SIZE * KERNEL_SIZE
        wgt = jax.random.normal(kw_key, (cout, cin, KERNEL_SIZE, KERNEL_SIZE),
                                jnp.float32) * (2.0 / fan_in) ** 0.5
        bias = jax.random.normal(kb_key, (cout,), jnp.float32) * 0.01
        # BatchNorm (eval) fold: gamma=1, beta=0, mean=0, var=1
        scale = jnp.full((cout,), 1.0 / jnp.sqrt(1.0 + eps), jnp.float32)
        shift = jnp.zeros((cout,), jnp.float32)
        convs.append((wgt, bias, scale, shift))
        h, w = conv_out_hw(h, w)
    num_features = channels[-1] * h * w
    key, klw, klb = jax.random.split(key, 3)
    lin_w = jax.random.normal(klw, (1, num_features), jnp.float32) \
        * (1.0 / num_features) ** 0.5
    lin_b = jax.random.normal(klb, (1,), jnp.float32) * 0.01
    return {"convs": convs, "linear": (lin_w, lin_b)}


def prepare_params(params):
    """Fold BN into the conv weights/shift, reshape to GEMM layout, pad K/N to
    multiples of 128 and cast to bf16 -- done once, outside the forward."""
    convs = []
    for wgt, bias, scale, shift in params["convs"]:
        cout, cin, kh, kw = wgt.shape
        k = cin * kh * kw
        wmat = wgt.reshape(cout, k).T * scale[None, :]         # (K, Cout), BN-folded
        sh = (bias * scale + shift).reshape(1, cout)           # (1, Cout)
        kp, np_ = _round_up(k, 128), _round_up(cout, 128)
        wmat = jnp.pad(wmat, ((0, kp - k), (0, np_ - cout))).astype(jnp.bfloat16)
        convs.append((wmat, sh.astype(jnp.float32)))
    return {"convs": tuple(convs), "linear": params["linear"]}


# ---------------------------------------------------------------------------
# Forward passes
# ---------------------------------------------------------------------------
def discriminator_forward(x, prepared):
    """x: (N, C, H, W) float32 -> class scores (N, 1) float32."""
    n = x.shape[0]
    h = jnp.transpose(x, (0, 2, 3, 1))                         # NHWC, once
    for w_p, shift in prepared["convs"]:
        patches = _patches_nhwc(h)                             # (N,Ho,Wo,Cin*k*k)
        _, ho, wo, kdim = patches.shape
        cols = patches.reshape(n * ho * wo, kdim)
        y = fused_gemm(cols, w_p, shift, apply_relu=True)      # (N*Ho*Wo, Cout)
        h = y.reshape(n, ho, wo, y.shape[1])                   # stay NHWC
    # single reorder to NCHW before flatten == torch .view(N, -1)
    feat = jnp.transpose(h, (0, 3, 1, 2)).reshape(n, -1)
    lin_w, lin_b = prepared["linear"]
    return feat @ lin_w.T + lin_b                              # Linear(F,1): plain jnp


def reference_forward_bf16(x, prepared):
    """Plain-JAX reference with the exact same folded bf16 operands."""
    n = x.shape[0]
    h = jnp.transpose(x, (0, 2, 3, 1))
    for w_p, shift in prepared["convs"]:
        cout = shift.shape[1]
        patches = _patches_nhwc(h)
        _, ho, wo, kdim = patches.shape
        cols = patches.reshape(n * ho * wo, kdim).astype(jnp.bfloat16)
        y = jnp.dot(cols, w_p[:kdim, :cout],
                    preferred_element_type=jnp.float32)
        y = jnp.maximum(y + shift, 0.0)
        h = y.reshape(n, ho, wo, cout)
    feat = jnp.transpose(h, (0, 3, 1, 2)).reshape(n, -1)
    lin_w, lin_b = prepared["linear"]
    return feat @ lin_w.T + lin_b


def reference_forward_f32(x, params):
    """Full-precision, unfolded reference (sanity check of the BN fold)."""
    n = x.shape[0]
    h = jnp.transpose(x, (0, 2, 3, 1))
    for wgt, bias, scale, shift in params["convs"]:
        cout, cin, kh, kw = wgt.shape
        patches = _patches_nhwc(h)
        _, ho, wo, kdim = patches.shape
        cols = patches.reshape(n * ho * wo, kdim)
        y = cols @ wgt.reshape(cout, kdim).T
        y = (y + bias) * scale + shift
        y = jnp.maximum(y, 0.0)
        h = y.reshape(n, ho, wo, cout)
    feat = jnp.transpose(h, (0, 3, 1, 2)).reshape(n, -1)
    lin_w, lin_b = params["linear"]
    return feat @ lin_w.T + lin_b


# ---------------------------------------------------------------------------
if __name__ == "__main__":
    in_size = (4, 16, 16)      # (C, H, W), small shapes
    batch = 2

    key = jax.random.PRNGKey(0)
    key, xkey, pkey = jax.random.split(key, 3)
    x = jax.random.normal(xkey, (batch, *in_size), jnp.float32)
    params = init_params(pkey, in_size)
    prepared = prepare_params(params)          # fold/pad/cast once, host-side

    fwd = jax.jit(discriminator_forward)
    out = jax.block_until_ready(fwd(x, prepared))

    ref_bf16 = jax.block_until_ready(reference_forward_bf16(x, prepared))
    ref_f32 = jax.block_until_ready(reference_forward_f32(x, params))

    assert out.shape == (batch, 1), out.shape
    # tight check vs. the same-precision (bf16-MXU, f32-accum) reference
    assert jnp.allclose(out, ref_bf16, rtol=2e-3, atol=2e-3), (out, ref_bf16)
    # loose check vs. full-f32 unfolded math (validates the BN fold / layout)
    assert jnp.allclose(out, ref_f32, rtol=1e-1, atol=1e-1), (out, ref_f32)
    print("KERNEL_OK")
</pallas_src>

<mosaic_0001>
module attributes {stable_mosaic.version = 11 : i64} {
  func.func @_fused_gemm_kernel(%arg0: i32, %arg1: i32, %arg2: i32, %arg3: memref<128x128xbf16, #tpu.memory_space<vmem>>, %arg4: memref<128x128xbf16, #tpu.memory_space<vmem>>, %arg5: memref<1x128xf32, #tpu.memory_space<vmem>>, %arg6: memref<128x128xf32, #tpu.memory_space<vmem>>, %arg7: memref<128x128xf32, #tpu.memory_space<vmem>>) attributes {dimension_semantics = [#tpu.dimension_semantics<parallel>, #tpu.dimension_semantics<parallel>, #tpu.dimension_semantics<arbitrary>], iteration_bounds = array<i64: 1, 1, 1>, scalar_prefetch = 0 : i64, scratch_operands = 1 : i64, tpu.core_type = #tpu.core_type<tc>, window_params = [{transform_indices = @transform_0, window_bounds = array<i64: 128, 128>}, {transform_indices = @transform_1, window_bounds = array<i64: 128, 128>}, {transform_indices = @transform_2, window_bounds = array<i64: 1, 128>}, {transform_indices = @transform_3, window_bounds = array<i64: 128, 128>}]} {
    %c0_i32 = arith.constant 0 : i32
    %0 = arith.cmpi eq, %arg2, %c0_i32 : i32
    %1 = arith.extui %0 : i1 to i32
    %c0_i32_0 = arith.constant 0 : i32
    %2 = arith.cmpi ne, %1, %c0_i32_0 : i32
    scf.if %2 {
      %cst_10 = arith.constant 0.000000e+00 : f32
      %12 = vector.broadcast %cst_10 : f32 to vector<128x128xf32>
      %c0_11 = arith.constant 0 : index
      %c0_12 = arith.constant 0 : index
      %13 = vector.load %arg7[%c0_11, %c0_12] : memref<128x128xf32, #tpu.memory_space<vmem>>, vector<128x128xf32>
      tpu.vector_store %arg7[%c0_11, %c0_12], %12 {strides = array<i32>} : memref<128x128xf32, #tpu.memory_space<vmem>>, vector<128x128xf32>,
    } else {
    }
    %c0 = arith.constant 0 : index
    %c0_1 = arith.constant 0 : index
    %3 = vector.load %arg7[%c0, %c0_1] : memref<128x128xf32, #tpu.memory_space<vmem>>, vector<128x128xf32>
    %c0_2 = arith.constant 0 : index
    %c0_3 = arith.constant 0 : index
    %4 = vector.load %arg3[%c0_2, %c0_3] : memref<128x128xbf16, #tpu.memory_space<vmem>>, vector<128x128xbf16>
    %c0_4 = arith.constant 0 : index
    %c0_5 = arith.constant 0 : index
    %5 = vector.load %arg4[%c0_4, %c0_5] : memref<128x128xbf16, #tpu.memory_space<vmem>>, vector<128x128xbf16>
    %cst = arith.constant dense<0.000000e+00> : vector<128x128xf32>
    %6 = tpu.matmul %4, %5, %cst {dimension_numbers = #tpu.dot_dimension_numbers<[1], [0], [0], [1], [0, 0, 1, 1], [], []>} : vector<128x128xbf16>, vector<128x128xbf16>, vector<128x128xf32> -> vector<128x128xf32>
    %7 = arith.addf %3, %6 : vector<128x128xf32>
    %c0_6 = arith.constant 0 : index
    %c0_7 = arith.constant 0 : index
    %8 = vector.load %arg7[%c0_6, %c0_7] : memref<128x128xf32, #tpu.memory_space<vmem>>, vector<128x128xf32>
    tpu.vector_store %arg7[%c0_6, %c0_7], %7 {strides = array<i32>} : memref<128x128xf32, #tpu.memory_space<vmem>>, vector<128x128xf32>,
    %c0_i32_8 = arith.constant 0 : i32
    %9 = arith.cmpi eq, %arg2, %c0_i32_8 : i32
    %10 = arith.extui %9 : i1 to i32
    %c0_i32_9 = arith.constant 0 : i32
    %11 = arith.cmpi ne, %10, %c0_i32_9 : i32
    scf.if %11 {
      %c0_10 = arith.constant 0 : index
      %c0_11 = arith.constant 0 : index
      %12 = vector.load %arg7[%c0_10, %c0_11] : memref<128x128xf32, #tpu.memory_space<vmem>>, vector<128x128xf32>
      %c0_12 = arith.constant 0 : index
      %c0_13 = arith.constant 0 : index
      %13 = vector.load %arg5[%c0_12, %c0_13] : memref<1x128xf32, #tpu.memory_space<vmem>>, vector<1x128xf32>
      %14 = vector.broadcast %13 : vector<1x128xf32> to vector<128x128xf32>
      %15 = arith.addf %12, %14 : vector<128x128xf32>
      %cst_14 = arith.constant 0.000000e+00 : f32
      %16 = vector.broadcast %cst_14 : f32 to vector<128x128xf32>
      %17 = arith.maximumf %15, %16 : vector<128x128xf32>
      %c0_15 = arith.constant 0 : index
      %c0_16 = arith.constant 0 : index
      %18 = vector.load %arg6[%c0_15, %c0_16] : memref<128x128xf32, #tpu.memory_space<vmem>>, vector<128x128xf32>
      tpu.vector_store %arg6[%c0_15, %c0_16], %17 {strides = array<i32>} : memref<128x128xf32, #tpu.memory_space<vmem>>, vector<128x128xf32>,
    } else {
    }
    return
  }
  func.func @transform_0(%arg0: i32, %arg1: i32, %arg2: i32) -> (i32, i32) {
    %c0_i32 = arith.constant 0 : i32
    return %arg0, %arg2 : i32, i32
  }
  func.func @transform_1(%arg0: i32, %arg1: i32, %arg2: i32) -> (i32, i32) {
    %c0_i32 = arith.constant 0 : i32
    return %arg2, %arg1 : i32, i32
  }
  func.func @transform_2(%arg0: i32, %arg1: i32, %arg2: i32) -> (i32, i32) {
    %c0_i32 = arith.constant 0 : i32
    %c0_i32_0 = arith.constant 0 : i32
    return %c0_i32, %arg1 : i32, i32
  }
  func.func @transform_3(%arg0: i32, %arg1: i32, %arg2: i32) -> (i32, i32) {
    %c0_i32 = arith.constant 0 : i32
    return %arg0, %arg1 : i32, i32
  }
}

module attributes {stable_mosaic.version = 11 : i64} {
  func.func @_fused_gemm_kernel(%arg0: i32, %arg1: i32, %arg2: i32, %arg3: memref<32x128xbf16, #tpu.memory_space<vmem>>, %arg4: memref<128x128xbf16, #tpu.memory_space<vmem>>, %arg5: memref<1x128xf32, #tpu.memory_space<vmem>>, %arg6: memref<32x128xf32, #tpu.memory_space<vmem>>, %arg7: memref<32x128xf32, #tpu.memory_space<vmem>>) attributes {dimension_semantics = [#tpu.dimension_semantics<parallel>, #tpu.dimension_semantics<parallel>, #tpu.dimension_semantics<arbitrary>], iteration_bounds = array<i64: 1, 1, 13>, scalar_prefetch = 0 : i64, scratch_operands = 1 : i64, tpu.core_type = #tpu.core_type<tc>, window_params = [{transform_indices = @transform_0, window_bounds = array<i64: 32, 128>}, {transform_indices = @transform_1, window_bounds = array<i64: 128, 128>}, {transform_indices = @transform_2, window_bounds = array<i64: 1, 128>}, {transform_indices = @transform_3, window_bounds = array<i64: 32, 128>}]} {
    %c0_i32 = arith.constant 0 : i32
    %0 = arith.cmpi eq, %arg2, %c0_i32 : i32
    %1 = arith.extui %0 : i1 to i32
    %c0_i32_0 = arith.constant 0 : i32
    %2 = arith.cmpi ne, %1, %c0_i32_0 : i32
    scf.if %2 {
      %cst_9 = arith.constant 0.000000e+00 : f32
      %12 = vector.broadcast %cst_9 : f32 to vector<32x128xf32>
      %c0_10 = arith.constant 0 : index
      %c0_11 = arith.constant 0 : index
      %13 = vector.load %arg7[%c0_10, %c0_11] : memref<32x128xf32, #tpu.memory_space<vmem>>, vector<32x128xf32>
      tpu.vector_store %arg7[%c0_10, %c0_11], %12 {strides = array<i32>} : memref<32x128xf32, #tpu.memory_space<vmem>>, vector<32x128xf32>,
    } else {
    }
    %c0 = arith.constant 0 : index
    %c0_1 = arith.constant 0 : index
    %3 = vector.load %arg7[%c0, %c0_1] : memref<32x128xf32, #tpu.memory_space<vmem>>, vector<32x128xf32>
    %c0_2 = arith.constant 0 : index
    %c0_3 = arith.constant 0 : index
    %4 = vector.load %arg3[%c0_2, %c0_3] : memref<32x128xbf16, #tpu.memory_space<vmem>>, vector<32x128xbf16>
    %c0_4 = arith.constant 0 : index
    %c0_5 = arith.constant 0 : index
    %5 = vector.load %arg4[%c0_4, %c0_5] : memref<128x128xbf16, #tpu.memory_space<vmem>>, vector<128x128xbf16>
    %cst = arith.constant dense<0.000000e+00> : vector<32x128xf32>
    %6 = tpu.matmul %4, %5, %cst {dimension_numbers = #tpu.dot_dimension_numbers<[1], [0], [0], [1], [0, 0, 1, 1], [], []>} : vector<32x128xbf16>, vector<128x128xbf16>, vector<32x128xf32> -> vector<32x128xf32>
    %7 = arith.addf %3, %6 : vector<32x128xf32>
    %c0_6 = arith.constant 0 : index
    %c0_7 = arith.constant 0 : index
    %8 = vector.load %arg7[%c0_6, %c0_7] : memref<32x128xf32, #tpu.memory_space<vmem>>, vector<32x128xf32>
    tpu.vector_store %arg7[%c0_6, %c0_7], %7 {strides = array<i32>} : memref<32x128xf32, #tpu.memory_space<vmem>>, vector<32x128xf32>,
    %c12_i32 = arith.constant 12 : i32
    %9 = arith.cmpi eq, %arg2, %c12_i32 : i32
    %10 = arith.extui %9 : i1 to i32
    %c0_i32_8 = arith.constant 0 : i32
    %11 = arith.cmpi ne, %10, %c0_i32_8 : i32
    scf.if %11 {
      %c0_9 = arith.constant 0 : index
      %c0_10 = arith.constant 0 : index
      %12 = vector.load %arg7[%c0_9, %c0_10] : memref<32x128xf32, #tpu.memory_space<vmem>>, vector<32x128xf32>
      %c0_11 = arith.constant 0 : index
      %c0_12 = arith.constant 0 : index
      %13 = vector.load %arg5[%c0_11, %c0_12] : memref<1x128xf32, #tpu.memory_space<vmem>>, vector<1x128xf32>
      %14 = vector.broadcast %13 : vector<1x128xf32> to vector<32x128xf32>
      %15 = arith.addf %12, %14 : vector<32x128xf32>
      %cst_13 = arith.constant 0.000000e+00 : f32
      %16 = vector.broadcast %cst_13 : f32 to vector<32x128xf32>
      %17 = arith.maximumf %15, %16 : vector<32x128xf32>
      %c0_14 = arith.constant 0 : index
      %c0_15 = arith.constant 0 : index
      %18 = vector.load %arg6[%c0_14, %c0_15] : memref<32x128xf32, #tpu.memory_space<vmem>>, vector<32x128xf32>
      tpu.vector_store %arg6[%c0_14, %c0_15], %17 {strides = array<i32>} : memref<32x128xf32, #tpu.memory_space<vmem>>, vector<32x128xf32>,
    } else {
    }
    return
  }
  func.func @transform_0(%arg0: i32, %arg1: i32, %arg2: i32) -> (i32, i32) {
    %c0_i32 = arith.constant 0 : i32
    return %arg0, %arg2 : i32, i32
  }
  func.func @transform_1(%arg0: i32, %arg1: i32, %arg2: i32) -> (i32, i32) {
    %c0_i32 = arith.constant 0 : i32
    return %arg2, %arg1 : i32, i32
  }
  func.func @transform_2(%arg0: i32, %arg1: i32, %arg2: i32) -> (i32, i32) {
    %c0_i32 = arith.constant 0 : i32
    %c0_i32_0 = arith.constant 0 : i32
    return %c0_i32, %arg1 : i32, i32
  }
  func.func @transform_3(%arg0: i32, %arg1: i32, %arg2: i32) -> (i32, i32) {
    %c0_i32 = arith.constant 0 : i32
    return %arg0, %arg1 : i32, i32
  }
}

module attributes {stable_mosaic.version = 11 : i64} {
  func.func @_fused_gemm_kernel(%arg0: i32, %arg1: i32, %arg2: i32, %arg3: memref<16x128xbf16, #tpu.memory_space<vmem>>, %arg4: memref<128x256xbf16, #tpu.memory_space<vmem>>, %arg5: memref<1x256xf32, #tpu.memory_space<vmem>>, %arg6: memref<16x256xf32, #tpu.memory_space<vmem>>, %arg7: memref<16x256xf32, #tpu.memory_space<vmem>>) attributes {dimension_semantics = [#tpu.dimension_semantics<parallel>, #tpu.dimension_semantics<parallel>, #tpu.dimension_semantics<arbitrary>], iteration_bounds = array<i64: 1, 1, 25>, scalar_prefetch = 0 : i64, scratch_operands = 1 : i64, tpu.core_type = #tpu.core_type<tc>, window_params = [{transform_indices = @transform_0, window_bounds = array<i64: 16, 128>}, {transform_indices = @transform_1, window_bounds = array<i64: 128, 256>}, {transform_indices = @transform_2, window_bounds = array<i64: 1, 256>}, {transform_indices = @transform_3, window_bounds = array<i64: 16, 256>}]} {
    %c0_i32 = arith.constant 0 : i32
    %0 = arith.cmpi eq, %arg2, %c0_i32 : i32
    %1 = arith.extui %0 : i1 to i32
    %c0_i32_0 = arith.constant 0 : i32
    %2 = arith.cmpi ne, %1, %c0_i32_0 : i32
    scf.if %2 {
      %cst_9 = arith.constant 0.000000e+00 : f32
      %12 = vector.broadcast %cst_9 : f32 to vector<16x256xf32>
      %c0_10 = arith.constant 0 : index
      %c0_11 = arith.constant 0 : index
      %13 = vector.load %arg7[%c0_10, %c0_11] : memref<16x256xf32, #tpu.memory_space<vmem>>, vector<16x256xf32>
      tpu.vector_store %arg7[%c0_10, %c0_11], %12 {strides = array<i32>} : memref<16x256xf32, #tpu.memory_space<vmem>>, vector<16x256xf32>,
    } else {
    }
    %c0 = arith.constant 0 : index
    %c0_1 = arith.constant 0 : index
    %3 = vector.load %arg7[%c0, %c0_1] : memref<16x256xf32, #tpu.memory_space<vmem>>, vector<16x256xf32>
    %c0_2 = arith.constant 0 : index
    %c0_3 = arith.constant 0 : index
    %4 = vector.load %arg3[%c0_2, %c0_3] : memref<16x128xbf16, #tpu.memory_space<vmem>>, vector<16x128xbf16>
    %c0_4 = arith.constant 0 : index
    %c0_5 = arith.constant 0 : index
    %5 = vector.load %arg4[%c0_4, %c0_5] : memref<128x256xbf16, #tpu.memory_space<vmem>>, vector<128x256xbf16>
    %cst = arith.constant dense<0.000000e+00> : vector<16x256xf32>
    %6 = tpu.matmul %4, %5, %cst {dimension_numbers = #tpu.dot_dimension_numbers<[1], [0], [0], [1], [0, 0, 1, 1], [], []>} : vector<16x128xbf16>, vector<128x256xbf16>, vector<16x256xf32> -> vector<16x256xf32>
    %7 = arith.addf %3, %6 : vector<16x256xf32>
    %c0_6 = arith.constant 0 : index
    %c0_7 = arith.constant 0 : index
    %8 = vector.load %arg7[%c0_6, %c0_7] : memref<16x256xf32, #tpu.memory_space<vmem>>, vector<16x256xf32>
    tpu.vector_store %arg7[%c0_6, %c0_7], %7 {strides = array<i32>} : memref<16x256xf32, #tpu.memory_space<vmem>>, vector<16x256xf32>,
    %c24_i32 = arith.constant 24 : i32
    %9 = arith.cmpi eq, %arg2, %c24_i32 : i32
    %10 = arith.extui %9 : i1 to i32
    %c0_i32_8 = arith.constant 0 : i32
    %11 = arith.cmpi ne, %10, %c0_i32_8 : i32
    scf.if %11 {
      %c0_9 = arith.constant 0 : index
      %c0_10 = arith.constant 0 : index
      %12 = vector.load %arg7[%c0_9, %c0_10] : memref<16x256xf32, #tpu.memory_space<vmem>>, vector<16x256xf32>
      %c0_11 = arith.constant 0 : index
      %c0_12 = arith.constant 0 : index
      %13 = vector.load %arg5[%c0_11, %c0_12] : memref<1x256xf32, #tpu.memory_space<vmem>>, vector<1x256xf32>
      %14 = vector.broadcast %13 : vector<1x256xf32> to vector<16x256xf32>
      %15 = arith.addf %12, %14 : vector<16x256xf32>
      %cst_13 = arith.constant 0.000000e+00 : f32
      %16 = vector.broadcast %cst_13 : f32 to vector<16x256xf32>
      %17 = arith.maximumf %15, %16 : vector<16x256xf32>
      %c0_14 = arith.constant 0 : index
      %c0_15 = arith.constant 0 : index
      %18 = vector.load %arg6[%c0_14, %c0_15] : memref<16x256xf32, #tpu.memory_space<vmem>>, vector<16x256xf32>
      tpu.vector_store %arg6[%c0_14, %c0_15], %17 {strides = array<i32>} : memref<16x256xf32, #tpu.memory_space<vmem>>, vector<16x256xf32>,
    } else {
    }
    return
  }
  func.func @transform_0(%arg0: i32, %arg1: i32, %arg2: i32) -> (i32, i32) {
    %c0_i32 = arith.constant 0 : i32
    return %arg0, %arg2 : i32, i32
  }
  func.func @transform_1(%arg0: i32, %arg1: i32, %arg2: i32) -> (i32, i32) {
    %c0_i32 = arith.constant 0 : i32
    return %arg2, %arg1 : i32, i32
  }
  func.func @transform_2(%arg0: i32, %arg1: i32, %arg2: i32) -> (i32, i32) {
    %c0_i32 = arith.constant 0 : i32
    %c0_i32_0 = arith.constant 0 : i32
    return %c0_i32, %arg1 : i32, i32
  }
  func.func @transform_3(%arg0: i32, %arg1: i32, %arg2: i32) -> (i32, i32) {
    %c0_i32 = arith.constant 0 : i32
    return %arg0, %arg1 : i32, i32
  }
}

</mosaic_0001>

<llo_original>
// kernel: discriminator_forward.3
$region0: #{discriminator_forward.3}
  #allocation0 [shape = 'u32[]', space=smem, size = 0x4, offset = 0x4, fixed_abs, tag = 'smem constant byte address 0x4 - core index']
  #allocation1 [shape = 'u32[144,128]{1,0:T(1,128)}', space=vmem, size = 0x12000, scoped, tag = 'internal scratch']
  #allocation2 [shape = 'f32[128,128]{1,0:T(8,128)}', space=vmem, size = 0x10000, scoped, tag = 'scratch operand']
  %s0 = inlined_call_operand.vmem [shape: bf16[128,128], index: 0, kind: input, shape index: {}]
  %s1 = inlined_call_operand.vmem [shape: bf16[128,128], index: 1, kind: input, shape index: {}]
  %s2 = inlined_call_operand.vmem [shape: f32[1,128], index: 2, kind: input, shape index: {}]
  %s3 = inlined_call_operand.vmem [shape: f32[128,128], index: 3, kind: output, shape index: {}]
  %s4 = sld [smem:[#allocation0]]
  $region30: #{discriminator_forward.3} parent=0
    _
  %s6 = ssub.s32 1, %s4
  %s7 = scalar_select 0, %s6, %s4
  // Predicated region
  $region2: #{discriminator_forward.3} parent=0 // pred_check
    _
  $region3: #{discriminator_forward.3} parent=0 // pred_check_branch
    %9 = sbr.rel (0) target = $region5
  $region4: #{discriminator_forward.3} parent=0 // pred_region
    _
  $region5: #{discriminator_forward.3} parent=0 // pred_fallthru
    _
  // Predicated region
  $region6: #{discriminator_forward.3} parent=0 // pred_check
    _
  $region7: #{discriminator_forward.3} parent=0 // pred_check_branch
    %11 = sbr.rel (0) target = $region9
  $region8: #{discriminator_forward.3} parent=0 // pred_region
    _
  $region9: #{discriminator_forward.3} parent=0 // pred_fallthru
    _
  // Predicated region
  $region10: #{discriminator_forward.3} parent=0 // pred_check
    _
  $region11: #{discriminator_forward.3} parent=0 // pred_check_branch
    %13 = sbr.rel (0) target = $region13
  $region12: #{discriminator_forward.3} parent=0 // pred_region
    _
  $region13: #{discriminator_forward.3} parent=0 // pred_fallthru
    _
  %p15 = scmp.eq.s32.totalorder 0, 0
  // Predicated region
  $region14: #{discriminator_forward.3} parent=0 // pred_check
    %p16 = pneg %p15
  $region15: #{discriminator_forward.3} parent=0 // pred_check_branch
    %18 = sbr.rel (%p16) target = $region17
  $region16: #{discriminator_forward.3} parent=0 // pred_region
    %19 = vst [vmem:[#allocation2] sm:$0xff] 0.0
    %20 = vst [vmem:[#allocation2 + $0x8] sm:$0xff] 0.0
    %21 = vst [vmem:[#allocation2 + $0x10] sm:$0xff] 0.0
    %22 = vst [vmem:[#allocation2 + $0x18] sm:$0xff] 0.0
    %23 = vst [vmem:[#allocation2 + $0x20] sm:$0xff] 0.0
    %24 = vst [vmem:[#allocation2 + $0x28] sm:$0xff] 0.0
    %25 = vst [vmem:[#allocation2 + $0x30] sm:$0xff] 0.0
    %26 = vst [vmem:[#allocation2 + $0x38] sm:$0xff] 0.0
    %27 = vst [vmem:[#allocation2 + $0x40] sm:$0xff] 0.0
    %28 = vst [vmem:[#allocation2 + $0x48] sm:$0xff] 0.0
    %29 = vst [vmem:[#allocation2 + $0x50] sm:$0xff] 0.0
    %30 = vst [vmem:[#allocation2 + $0x58] sm:$0xff] 0.0
    %31 = vst [vmem:[#allocation2 + $0x60] sm:$0xff] 0.0
    %32 = vst [vmem:[#allocation2 + $0x68] sm:$0xff] 0.0
    %33 = vst [vmem:[#allocation2 + $0x70] sm:$0xff] 0.0
    %34 = vst [vmem:[#allocation2 + $0x78] sm:$0xff] 0.0
  $region17: #{discriminator_forward.3} parent=0 // pred_fallthru
    _
  %v35 = vld [vmem:[#allocation2] sm:$0xff]
  %v36 = vld [vmem:[#allocation2 + $0x8] sm:$0xff]
  %v37 = vld [vmem:[#allocation2 + $0x10] sm:$0xff]
  %v38 = vld [vmem:[#allocation2 + $0x18] sm:$0xff]
  %v39 = vld [vmem:[#allocation2 + $0x20] sm:$0xff]
  %v40 = vld [vmem:[#allocation2 + $0x28] sm:$0xff]
  %v41 = vld [vmem:[#allocation2 + $0x30] sm:$0xff]
  %v42 = vld [vmem:[#allocation2 + $0x38] sm:$0xff]
  %v43 = vld [vmem:[#allocation2 + $0x40] sm:$0xff]
  %v44 = vld [vmem:[#allocation2 + $0x48] sm:$0xff]
  %v45 = vld [vmem:[#allocation2 + $0x50] sm:$0xff]
  %v46 = vld [vmem:[#allocation2 + $0x58] sm:$0xff]
  %v47 = vld [vmem:[#allocation2 + $0x60] sm:$0xff]
  %v48 = vld [vmem:[#allocation2 + $0x68] sm:$0xff]
  %v49 = vld [vmem:[#allocation2 + $0x70] sm:$0xff]
  %v50 = vld [vmem:[#allocation2 + $0x78] sm:$0xff]
  %v51 = vld [vmem:[%s0] sm:$0xf]
  %v52 = vld [vmem:[%s0 + $0x4] sm:$0xf]
  %v53 = vld [vmem:[%s0 + $0x8] sm:$0xf]
  %v54 = vld [vmem:[%s0 + $0xc] sm:$0xf]
  %v55 = vld [vmem:[%s0 + $0x10] sm:$0xf]
  %v56 = vld [vmem:[%s0 + $0x14] sm:$0xf]
  %v57 = vld [vmem:[%s0 + $0x18] sm:$0xf]
  %v58 = vld [vmem:[%s0 + $0x1c] sm:$0xf]
  %v59 = vld [vmem:[%s0 + $0x20] sm:$0xf]
  %v60 = vld [vmem:[%s0 + $0x24] sm:$0xf]
  %v61 = vld [vmem:[%s0 + $0x28] sm:$0xf]
  %v62 = vld [vmem:[%s0 + $0x2c] sm:$0xf]
  %v63 = vld [vmem:[%s0 + $0x30] sm:$0xf]
  %v64 = vld [vmem:[%s0 + $0x34] sm:$0xf]
  %v65 = vld [vmem:[%s0 + $0x38] sm:$0xf]
  %v66 = vld [vmem:[%s0 + $0x3c] sm:$0xf]
  %v67 = vld [vmem:[%s1] sm:$0xf]
  %v68 = vld [vmem:[%s1 + $0x4] sm:$0xf]
  %v69 = vld [vmem:[%s1 + $0x8] sm:$0xf]
  %v70 = vld [vmem:[%s1 + $0xc] sm:$0xf]
  %v71 = vld [vmem:[%s1 + $0x10] sm:$0xf]
  %v72 = vld [vmem:[%s1 + $0x14] sm:$0xf]
  %v73 = vld [vmem:[%s1 + $0x18] sm:$0xf]
  %v74 = vld [vmem:[%s1 + $0x1c] sm:$0xf]
  %v75 = vld [vmem:[%s1 + $0x20] sm:$0xf]
  %v76 = vld [vmem:[%s1 + $0x24] sm:$0xf]
  %v77 = vld [vmem:[%s1 + $0x28] sm:$0xf]
  %v78 = vld [vmem:[%s1 + $0x2c] sm:$0xf]
  %v79 = vld [vmem:[%s1 + $0x30] sm:$0xf]
  %v80 = vld [vmem:[%s1 + $0x34] sm:$0xf]
  %v81 = vld [vmem:[%s1 + $0x38] sm:$0xf]
  %v82 = vld [vmem:[%s1 + $0x3c] sm:$0xf]
  %v99 = vunpack.c.l.b16 %v51
  %v100 = vunpack.c.l.b16 %v52
  %v101 = vunpack.c.l.b16 %v53
  %v102 = vunpack.c.l.b16 %v54
  %v103 = vunpack.c.l.b16 %v55
  %v104 = vunpack.c.l.b16 %v56
  %v105 = vunpack.c.l.b16 %v57
  %v106 = vunpack.c.l.b16 %v58
  %v107 = vunpack.c.l.b16 %v59
  %v108 = vunpack.c.l.b16 %v60
  %v109 = vunpack.c.l.b16 %v61
  %v110 = vunpack.c.l.b16 %v62
  %v111 = vunpack.c.l.b16 %v63
  %v112 = vunpack.c.l.b16 %v64
  %v113 = vunpack.c.l.b16 %v65
  %v114 = vunpack.c.l.b16 %v66
  %v115 = vpack.c.b16 %v100, %v99
  %v116 = vpack.c.b16 %v102, %v101
  %v117 = vpack.c.b16 %v104, %v103
  %v118 = vpack.c.b16 %v106, %v105
  %v119 = vpack.c.b16 %v108, %v107
  %v120 = vpack.c.b16 %v110, %v109
  %v121 = vpack.c.b16 %v112, %v111
  %v122 = vpack.c.b16 %v114, %v113
  %v147 = vunpack.c.l.b16 %v67
  %v148 = vunpack.c.l.b16 %v68
  %v149 = vunpack.c.l.b16 %v69
  %v150 = vunpack.c.l.b16 %v70
  %v151 = vunpack.c.l.b16 %v71
  %v152 = vunpack.c.l.b16 %v72
  %v153 = vunpack.c.l.b16 %v73
  %v154 = vunpack.c.l.b16 %v74
  %v155 = vunpack.c.l.b16 %v75
  %v156 = vunpack.c.l.b16 %v76
  %v157 = vunpack.c.l.b16 %v77
  %v158 = vunpack.c.l.b16 %v78
  %v159 = vunpack.c.l.b16 %v79
  %v160 = vunpack.c.l.b16 %v80
  %v161 = vunpack.c.l.b16 %v81
  %v162 = vunpack.c.l.b16 %v82
  %v163 = vpack.c.b16 %v148, %v147
  %v164 = vpack.c.b16 %v150, %v149
  %v165 = vpack.c.b16 %v152, %v151
  %v166 = vpack.c.b16 %v154, %v153
  %v167 = vpack.c.b16 %v156, %v155
  %v168 = vpack.c.b16 %v158, %v157
  %v169 = vpack.c.b16 %v160, %v159
  %v170 = vpack.c.b16 %v162, %v161
  %179 = vmatprep.subr.bf16.mxu0 0
  %180 = vmatpush1.bf16.msra.mxu0 %v163
  %181 = vmatprep.subr.bf16.mxu0 0
  %182 = vmatpush1.bf16.msra.mxu0 %v164
  %183 = vmatprep.subr.bf16.mxu0 0
  %184 = vmatpush1.bf16.msra.mxu0 %v165
  %185 = vmatprep.subr.bf16.mxu0 0
  %186 = vmatpush1.bf16.msra.mxu0 %v166
  %187 = vmatprep.subr.bf16.mxu0 0
  %188 = vmatpush1.bf16.msra.mxu0 %v167
  %189 = vmatprep.subr.bf16.mxu0 0
  %190 = vmatpush1.bf16.msra.mxu0 %v168
  %191 = vmatprep.subr.bf16.mxu0 0
  %192 = vmatpush1.bf16.msra.mxu0 %v169
  %193 = vmatprep.subr.bf16.mxu0 0
  %194 = vmatpush1.bf16.msra.mxu0 %v170
  %195 = vmatprep.subr.bf16.mxu0 0
  %196 = vmatpush1.bf16.msra.mxu0 0
  %197 = vmatprep.subr.bf16.mxu0 0
  %198 = vmatpush1.bf16.msra.mxu0 0
  %199 = vmatprep.subr.bf16.mxu0 0
  %200 = vmatpush1.bf16.msra.mxu0 0
  %201 = vmatprep.subr.bf16.mxu0 0
  %202 = vmatpush1.bf16.msra.mxu0 0
  %203 = vmatprep.subr.bf16.mxu0 0
  %204 = vmatpush1.bf16.msra.mxu0 0
  %205 = vmatprep.subr.bf16.mxu0 0
  %206 = vmatpush1.bf16.msra.mxu0 0
  %207 = vmatprep.subr.bf16.mxu0 0
  %208 = vmatpush1.bf16.msra.mxu0 0
  %209 = vmatprep.subr.bf16.mxu0 0
  %210 = vmatpush1.bf16.msra.mxu0 0
  %211 = vmatprep.mubr.bf16.mxu0 0
  %212 = vmatmul.mubr.bf16.gmra.mrb[0].mxu0 %v115
  %v213 = vpop.f32.mrb[0].mxu0
  %v214 = vadd.f32 0.0, %v213
  %v215 = vpop.f32.mrb[0].mxu0
  %v216 = vpop.f32.mrb[0].mxu0
  %v217 = vadd.f32 0.0, %v216
  %v218 = vpop.f32.mrb[0].mxu0
  %219 = vmatprep.mubr.bf16.mxu0 0
  %220 = vmatmul.mubr.bf16.gmra.mrb[0].mxu0 %v116
  %v221 = vpop.f32.mrb[0].mxu0
  %v222 = vadd.f32 0.0, %v221
  %v223 = vpop.f32.mrb[0].mxu0
  %v224 = vpop.f32.mrb[0].mxu0
  %v225 = vadd.f32 0.0, %v224
  %v226 = vpop.f32.mrb[0].mxu0
  %227 = vmatprep.mubr.bf16.mxu0 0
  %228 = vmatmul.mubr.bf16.gmra.mrb[0].mxu0 %v117
  %v229 = vpop.f32.mrb[0].mxu0
  %v230 = vadd.f32 0.0, %v229
  %v231 = vpop.f32.mrb[0].mxu0
  %v232 = vpop.f32.mrb[0].mxu0
  %v233 = vadd.f32 0.0, %v232
  %v234 = vpop.f32.mrb[0].mxu0
  %235 = vmatprep.mubr.bf16.mxu0 0
  %236 = vmatmul.mubr.bf16.gmra.mrb[0].mxu0 %v118
  %v237 = vpop.f32.mrb[0].mxu0
  %v238 = vadd.f32 0.0, %v237
  %v239 = vpop.f32.mrb[0].mxu0
  %v240 = vpop.f32.mrb[0].mxu0
  %v241 = vadd.f32 0.0, %v240
  %v242 = vpop.f32.mrb[0].mxu0
  %243 = vmatprep.mubr.bf16.mxu0 0
  %244 = vmatmul.mubr.bf16.gmra.mrb[0].mxu0 %v119
  %v245 = vpop.f32.mrb[0].mxu0
  %v246 = vadd.f32 0.0, %v245
  %v247 = vpop.f32.mrb[0].mxu0
  %v248 = vpop.f32.mrb[0].mxu0
  %v249 = vadd.f32 0.0, %v248
  %v250 = vpop.f32.mrb[0].mxu0
  %251 = vmatprep.mubr.bf16.mxu0 0
  %252 = vmatmul.mubr.bf16.gmra.mrb[0].mxu0 %v120
  %v253 = vpop.f32.mrb[0].mxu0
  %v254 = vadd.f32 0.0, %v253
  %v255 = vpop.f32.mrb[0].mxu0
  %v256 = vpop.f32.mrb[0].mxu0
  %v257 = vadd.f32 0.0, %v256
  %v258 = vpop.f32.mrb[0].mxu0
  %259 = vmatprep.mubr.bf16.mxu0 0
  %260 = vmatmul.mubr.bf16.gmra.mrb[0].mxu0 %v121
  %v261 = vpop.f32.mrb[0].mxu0
  %v262 = vadd.f32 0.0, %v261
  %v263 = vpop.f32.mrb[0].mxu0
  %v264 = vpop.f32.mrb[0].mxu0
  %v265 = vadd.f32 0.0, %v264
  %v266 = vpop.f32.mrb[0].mxu0
  %267 = vmatprep.mubr.bf16.mxu0 0
  %268 = vmatmul.mubr.bf16.gmra.mrb[0].mxu0 %v122
  %v269 = vpop.f32.mrb[0].mxu0
  %v270 = vadd.f32 0.0, %v269
  %v271 = vpop.f32.mrb[0].mxu0
  %v272 = vpop.f32.mrb[0].mxu0
  %v273 = vadd.f32 0.0, %v272
  %v274 = vpop.f32.mrb[0].mxu0
  %275 = vdwg.mxu0
  %v276 = vadd.f32 %v35, %v214
  %v277 = vadd.f32 %v36, %v217
  %v278 = vadd.f32 %v37, %v222
  %v279 = vadd.f32 %v38, %v225
  %v280 = vadd.f32 %v39, %v230
  %v281 = vadd.f32 %v40, %v233
  %v282 = vadd.f32 %v41, %v238
  %v283 = vadd.f32 %v42, %v241
  %v284 = vadd.f32 %v43, %v246
  %v285 = vadd.f32 %v44, %v249
  %v286 = vadd.f32 %v45, %v254
  %v287 = vadd.f32 %v46, %v257
  %v288 = vadd.f32 %v47, %v262
  %v289 = vadd.f32 %v48, %v265
  %v290 = vadd.f32 %v49, %v270
  %v291 = vadd.f32 %v50, %v273
  %292 = vst [vmem:[#allocation2] sm:$0xff] %v276
  %293 = vst [vmem:[#allocation2 + $0x8] sm:$0xff] %v277
  %294 = vst [vmem:[#allocation2 + $0x10] sm:$0xff] %v278
  %295 = vst [vmem:[#allocation2 + $0x18] sm:$0xff] %v279
  %296 = vst [vmem:[#allocation2 + $0x20] sm:$0xff] %v280
  %297 = vst [vmem:[#allocation2 + $0x28] sm:$0xff] %v281
  %298 = vst [vmem:[#allocation2 + $0x30] sm:$0xff] %v282
  %299 = vst [vmem:[#allocation2 + $0x38] sm:$0xff] %v283
  %300 = vst [vmem:[#allocation2 + $0x40] sm:$0xff] %v284
  %301 = vst [vmem:[#allocation2 + $0x48] sm:$0xff] %v285
  %302 = vst [vmem:[#allocation2 + $0x50] sm:$0xff] %v286
  %303 = vst [vmem:[#allocation2 + $0x58] sm:$0xff] %v287
  %304 = vst [vmem:[#allocation2 + $0x60] sm:$0xff] %v288
  %305 = vst [vmem:[#allocation2 + $0x68] sm:$0xff] %v289
  %306 = vst [vmem:[#allocation2 + $0x70] sm:$0xff] %v290
  %307 = vst [vmem:[#allocation2 + $0x78] sm:$0xff] %v291
  // Predicated region
  $region18: #{discriminator_forward.3} parent=0 // pred_check
    %p308 = pneg %p15
  $region19: #{discriminator_forward.3} parent=0 // pred_check_branch
    %310 = sbr.rel (%p308) target = $region21
  $region20: #{discriminator_forward.3} parent=0 // pred_region
    %v311 = vld [vmem:[#allocation2] sm:$0xff]
    %v312 = vld [vmem:[#allocation2 + $0x8] sm:$0xff]
    %v313 = vld [vmem:[#allocation2 + $0x10] sm:$0xff]
    %v314 = vld [vmem:[#allocation2 + $0x18] sm:$0xff]
    %v315 = vld [vmem:[#allocation2 + $0x20] sm:$0xff]
    %v316 = vld [vmem:[#allocation2 + $0x28] sm:$0xff]
    %v317 = vld [vmem:[#allocation2 + $0x30] sm:$0xff]
    %v318 = vld [vmem:[#allocation2 + $0x38] sm:$0xff]
    %v319 = vld [vmem:[#allocation2 + $0x40] sm:$0xff]
    %v320 = vld [vmem:[#allocation2 + $0x48] sm:$0xff]
    %v321 = vld [vmem:[#allocation2 + $0x50] sm:$0xff]
    %v322 = vld [vmem:[#allocation2 + $0x58] sm:$0xff]
    %v323 = vld [vmem:[#allocation2 + $0x60] sm:$0xff]
    %v324 = vld [vmem:[#allocation2 + $0x68] sm:$0xff]
    %v325 = vld [vmem:[#allocation2 + $0x70] sm:$0xff]
    %v326 = vld [vmem:[#allocation2 + $0x78] sm:$0xff]
    %v327 = vld [vmem:[%s2] sm:$0x1]
    %v329 = vlaneseq
    %v330 = vshrl.u32 %v329, 7
    %v331 = vsub.s32 0, %v330
    %v332 = vrot.slane %v327, %v331
    %v334 = vadd.f32 %v311, %v332
    %v335 = vadd.f32 %v312, %v332
    %v336 = vadd.f32 %v313, %v332
    %v337 = vadd.f32 %v314, %v332
    %v338 = vadd.f32 %v315, %v332
    %v339 = vadd.f32 %v316, %v332
    %v340 = vadd.f32 %v317, %v332
    %v341 = vadd.f32 %v318, %v332
    %v342 = vadd.f32 %v319, %v332
    %v343 = vadd.f32 %v320, %v332
    %v344 = vadd.f32 %v321, %v332
    %v345 = vadd.f32 %v322, %v332
    %v346 = vadd.f32 %v323, %v332
    %v347 = vadd.f32 %v324, %v332
    %v348 = vadd.f32 %v325, %v332
    %v349 = vadd.f32 %v326, %v332
    %v350 = vmax.f32 %v334, 0.0
    %v351 = vmax.f32 %v335, 0.0
    %v352 = vmax.f32 %v336, 0.0
    %v353 = vmax.f32 %v337, 0.0
    %v354 = vmax.f32 %v338, 0.0
    %v355 = vmax.f32 %v339, 0.0
    %v356 = vmax.f32 %v340, 0.0
    %v357 = vmax.f32 %v341, 0.0
    %v358 = vmax.f32 %v342, 0.0
    %v359 = vmax.f32 %v343, 0.0
    %v360 = vmax.f32 %v344, 0.0
    %v361 = vmax.f32 %v345, 0.0
    %v362 = vmax.f32 %v346, 0.0
    %v363 = vmax.f32 %v347, 0.0
    %v364 = vmax.f32 %v348, 0.0
    %v365 = vmax.f32 %v349, 0.0
    %366 = vst [vmem:[%s3] sm:$0xff] %v350
    %367 = vst [vmem:[%s3 + $0x8] sm:$0xff] %v351
    %368 = vst [vmem:[%s3 + $0x10] sm:$0xff] %v352
    %369 = vst [vmem:[%s3 + $0x18] sm:$0xff] %v353
    %370 = vst [vmem:[%s3 + $0x20] sm:$0xff] %v354
    %371 = vst [vmem:[%s3 + $0x28] sm:$0xff] %v355
    %372 = vst [vmem:[%s3 + $0x30] sm:$0xff] %v356
    %373 = vst [vmem:[%s3 + $0x38] sm:$0xff] %v357
    %374 = vst [vmem:[%s3 + $0x40] sm:$0xff] %v358
    %375 = vst [vmem:[%s3 + $0x48] sm:$0xff] %v359
    %376 = vst [vmem:[%s3 + $0x50] sm:$0xff] %v360
    %377 = vst [vmem:[%s3 + $0x58] sm:$0xff] %v361
    %378 = vst [vmem:[%s3 + $0x60] sm:$0xff] %v362
    %379 = vst [vmem:[%s3 + $0x68] sm:$0xff] %v363
    %380 = vst [vmem:[%s3 + $0x70] sm:$0xff] %v364
    %381 = vst [vmem:[%s3 + $0x78] sm:$0xff] %v365
  $region21: #{discriminator_forward.3} parent=0 // pred_fallthru
    _
  // Predicated region
  $region22: #{discriminator_forward.3} parent=0 // pred_check
    _
  $region23: #{discriminator_forward.3} parent=0 // pred_check_branch
    %383 = sbr.rel (0) target = $region25
  $region24: #{discriminator_forward.3} parent=0 // pred_region
    _
  $region25: #{discriminator_forward.3} parent=0 // pred_fallthru
    _
  // Predicated region
  $region26: #{discriminator_forward.3} parent=0 // pred_check
    _
  $region27: #{discriminator_forward.3} parent=0 // pred_check_branch
    %385 = sbr.rel (0) target = $region29
  $region28: #{discriminator_forward.3} parent=0 // pred_region
    _
  $region29: #{discriminator_forward.3} parent=0 // pred_fallthru
    _

// kernel: discriminator_forward.4
$region0: #{discriminator_forward.4}
  #allocation0 [shape = 'u32[]', space=smem, size = 0x4, offset = 0x4, fixed_abs, tag = 'smem constant byte address 0x4 - core index']
  #allocation1 [shape = 'u32[144,128]{1,0:T(1,128)}', space=vmem, size = 0x12000, scoped, tag = 'internal scratch']
  #allocation2 [shape = 'f32[32,128]{1,0:T(8,128)}', space=vmem, size = 0x4000, scoped, tag = 'scratch operand']
  %s0 = inlined_call_operand.vmem [shape: bf16[32,1664], index: 0, kind: input, shape index: {}]
  %s1 = inlined_call_operand.vmem [shape: bf16[1664,128], index: 1, kind: input, shape index: {}]
  %s2 = inlined_call_operand.vmem [shape: f32[1,128], index: 2, kind: input, shape index: {}]
  %s3 = inlined_call_operand.vmem [shape: f32[32,128], index: 3, kind: output, shape index: {}]
  %s4 = sld [smem:[#allocation0]]
  $region94: #{discriminator_forward.4} parent=0
    _
  %s6 = ssub.s32 1, %s4
  %s7 = scalar_select 0, %s6, %s4
  $region1: #{discriminator_forward.4} parent=0
    #allocation3 [shape = 'u8[16384]{0}', space=vmem, size = 0x4000, scoped, tag = 'input window, operand 0']
    loop: start=0, step=1, limit=15
    $region2: #{discriminator_forward.4} parent=1 // loop_pre_header
      _
    $region3: #{discriminator_forward.4} parent=1 // loop_header
      %s9 = sphi 0, %s13
      %p10 = scmp.ge.s32.totalorder %s9, 15
      %s16 = sphi 0, %s35
      %s17 = sphi 0, %s31
      %s18 = sphi 0, %s27
      %s19 = sphi 0, %s16
      %s20 = sphi 0, %s17
      %s21 = sphi 0, %s18
      %s22 = sphi 0, %s19
      %s23 = sphi 0, %s20
      %s24 = sphi 0, %s21
      %s40 = sphi 0, %s42
      %s43 = sphi 0, %s40
      %s44 = sphi 0, %s43
      %s60 = sphi 0, %s44
      %s68 = sphi 0, %s70
      %s71 = sphi 0, %s68
      %s72 = sphi 0, %s71
      %s88 = sphi 0, %s72
      %s94 = sphi 0, %s96
      %s97 = sphi 0, %s94
      %s98 = sphi 0, %s97
      %s114 = sphi 0, %s98
      %s122 = sphi 0, %s124
      %s125 = sphi 0, %s122
      %s126 = sphi 0, %s125
      %s142 = sphi 0, %s126
    $region4: #{discriminator_forward.4} parent=1 // loop_header_branch
      %12 = sbr.rel (%p10) target = $region8
    $region5: #{discriminator_forward.4} parent=1 // loop_body
      %s14 = ssub.s32 %s9, 1
      %s15 = ssub.s32 %s9, 2
      %s25 = sadd.s32 1, %s18
      %p26 = scmp.ge.s32.totalorder %s25, 13
      %s27 = scalar_select %p26, 0, %s25
      %s28 = sadd.s32 1, %s17
      %s29 = scalar_select %p26, %s28, %s17
      %p30 = scmp.ge.s32.totalorder %s29, 1
      %s31 = scalar_select %p30, 0, %s29
      %s32 = sadd.s32 1, %s16
      %s33 = scalar_select %p30, %s32, %s16
      %p34 = scmp.ge.s32.totalorder %s33, 1
      %s35 = scalar_select %p34, 0, %s33
      %s36 = ssub.s32 %s16, %s35
      %s37 = ssub.s32 %s18, %s27
      %s38 = sor.u32 %s36, %s37
      %p39 = scmp.eq.s32.totalorder %s38, 0
      %s41 = sadd.s32 %s40, 1
      %s42 = scalar_select %p39, %s40, %s41
      %p45 = pneg %p39
      %p46 = scmp.eq.s32.totalorder %s9, 12
      %p47 = por %p45, %p46
      %p48 = scmp.ne.s32.totalorder %s40, %s43
      %p49 = scmp.eq.s32.totalorder %s9, 0
      %p50 = por %p48, %p49
      %p51 = scmp.ne.s32.totalorder %s40, %s43
      %p52 = scmp.eq.s32.totalorder %s14, 12
      %p53 = por %p51, %p52
      %p54 = scmp.ne.s32.totalorder %s43, %s44
      %p55 = scmp.eq.s32.totalorder %s14, 0
      %p56 = por %p54, %p55
      %p57 = scmp.ne.s32.totalorder %s43, %s44
      %p58 = scmp.eq.s32.totalorder %s15, 12
      %p59 = por %p57, %p58
      %p61 = scmp.ne.s32.totalorder %s44, %s60
      %p62 = scmp.eq.s32.totalorder %s15, 0
      %p63 = por %p61, %p62
      %s64 = ssub.s32 %s18, %s27
      %s65 = ssub.s32 %s17, %s31
      %s66 = sor.u32 %s64, %s65
      %p67 = scmp.eq.s32.totalorder %s66, 0
      %s69 = sadd.s32 %s68, 1
      %s70 = scalar_select %p67, %s68, %s69
      %p73 = pneg %p67
      %p74 = scmp.eq.s32.totalorder %s9, 12
      %p75 = por %p73, %p74
      %p76 = scmp.ne.s32.totalorder %s68, %s71
      %p77 = scmp.eq.s32.totalorder %s9, 0
      %p78 = por %p76, %p77
      %p79 = scmp.ne.s32.totalorder %s68, %s71
      %p80 = scmp.eq.s32.totalorder %s14, 12
      %p81 = por %p79, %p80
      %p82 = scmp.ne.s32.totalorder %s71, %s72
      %p83 = scmp.eq.s32.totalorder %s14, 0
      %p84 = por %p82, %p83
      %p85 = scmp.ne.s32.totalorder %s71, %s72
      %p86 = scmp.eq.s32.totalorder %s15, 12
      %p87 = por %p85, %p86
      %p89 = scmp.ne.s32.totalorder %s72, %s88
      %p90 = scmp.eq.s32.totalorder %s15, 0
      %p91 = por %p89, %p90
      %s92 = ssub.s32 %s17, %s31
      %p93 = scmp.eq.s32.totalorder %s92, 0
      %s95 = sadd.s32 %s94, 1
      %s96 = scalar_select %p93, %s94, %s95
      %p99 = pneg %p93
      %p100 = scmp.eq.s32.totalorder %s9, 12
      %p101 = por %p99, %p100
      %p102 = scmp.ne.s32.totalorder %s94, %s97
      %p103 = scmp.eq.s32.totalorder %s9, 0
      %p104 = por %p102, %p103
      %p105 = scmp.ne.s32.totalorder %s94, %s97
      %p106 = scmp.eq.s32.totalorder %s14, 12
      %p107 = por %p105, %p106
      %p108 = scmp.ne.s32.totalorder %s97, %s98
      %p109 = scmp.eq.s32.totalorder %s14, 0
      %p110 = por %p108, %p109
      %p111 = scmp.ne.s32.totalorder %s97, %s98
      %p112 = scmp.eq.s32.totalorder %s15, 12
      %p113 = por %p111, %p112
      %p115 = scmp.ne.s32.totalorder %s98, %s114
      %p116 = scmp.eq.s32.totalorder %s15, 0
      %p117 = por %p115, %p116
      %s118 = ssub.s32 %s16, %s35
      %s119 = ssub.s32 %s17, %s31
      %s120 = sor.u32 %s118, %s119
      %p121 = scmp.eq.s32.totalorder %s120, 0
      %s123 = sadd.s32 %s122, 1
      %s124 = scalar_select %p121, %s122, %s123
      %p127 = pneg %p121
      %p128 = scmp.eq.s32.totalorder %s9, 12
      %p129 = por %p127, %p128
      %p130 = scmp.ne.s32.totalorder %s122, %s125
      %p131 = scmp.eq.s32.totalorder %s9, 0
      %p132 = por %p130, %p131
      %p133 = scmp.ne.s32.totalorder %s122, %s125
      %p134 = scmp.eq.s32.totalorder %s14, 12
      %p135 = por %p133, %p134
      %p136 = scmp.ne.s32.totalorder %s125, %s126
      %p137 = scmp.eq.s32.totalorder %s14, 0
      %p138 = por %p136, %p137
      %p139 = scmp.ne.s32.totalorder %s125, %s126
      %p140 = scmp.eq.s32.totalorder %s15, 12
      %p141 = por %p139, %p140
      %p143 = scmp.ne.s32.totalorder %s126, %s142
      %p144 = scmp.eq.s32.totalorder %s15, 0
      %p145 = por %p143, %p144
      %p146 = scmp.le.s32.totalorder 1, %s9
      %p147 = scmp.lt.s32.totalorder %s9, 14
      %p148 = pnand %p146, %p147
      %p149 = pneg %p148
      // Predicated region
      $region9: #{discriminator_forward.4} parent=5 // pred_check
        _
      $region10: #{discriminator_forward.4} parent=5 // pred_check_branch
        %151 = sbr.rel (%p148) target = $region12
      $region11: #{discriminator_forward.4} parent=5 // pred_region
        %s152 = ssub.s32 %s9, 1
        // Predicated region
        $region13: #{discriminator_forward.4} parent=11 // pred_check
          %p153 = pneg %p110
        $region14: #{discriminator_forward.4} parent=11 // pred_check_branch
          %155 = sbr.rel (%p153) target = $region16
        $region15: #{discriminator_forward.4} parent=11 // pred_region
          %p156 = scmp.lt.s32.totalorder %s20, 0
          %s157 = scalar_select %p156, %s20, 0
          %s158 = scalar_lea.vmem %s2, %s157
        $region16: #{discriminator_forward.4} parent=11 // pred_fallthru
          _
      $region12: #{discriminator_forward.4} parent=5 // pred_fallthru
        _
      %p159 = scmp.lt.s32.totalorder %s9, 13
      // Predicated region
      $region17: #{discriminator_forward.4} parent=5 // pred_check
        %p160 = pneg %p159
      $region18: #{discriminator_forward.4} parent=5 // pred_check_branch
        %162 = sbr.rel (%p160) target = $region20
      $region19: #{discriminator_forward.4} parent=5 // pred_region
        // Predicated region
        $region21: #{discriminator_forward.4} parent=19 // pred_check
          %p163 = pneg %p50
        $region22: #{discriminator_forward.4} parent=19 // pred_check_branch
          %165 = sbr.rel (%p163) target = $region24
        $region23: #{discriminator_forward.4} parent=19 // pred_region
          %s166 = sand.u32 %s40, 1
          %s167 = sand.u32 %s40, 1
          %s168 = smul.addr %s167, 16
          %s169 = scalar_lea.vmem [#allocation3], %s168
          %s170 = smul.u32 4, %s16
          %s171 = smul.addr %s170, 13
          %s172 = sadd.s32 %s18, %s171
          %s173 = smul.addr %s172, 4
          %s174 = scalar_lea.vmem %s0, %s173
          // Predicated region
          $region25: #{discriminator_forward.4} parent=23 // pred_check
            _
          $region26: #{discriminator_forward.4} parent=23 // pred_check_branch
            %176 = sbr.rel (0) target = $region28
          $region27: #{discriminator_forward.4} parent=23 // pred_region
            // Predicated region
            $region29: #{discriminator_forward.4} parent=27 // pred_check
              _
            $region30: #{discriminator_forward.4} parent=27 // pred_check_branch
              %178 = sbr.rel target = $region32
            $region31: #{discriminator_forward.4} parent=27 // pred_region
              // Predicated region
              $region44: #{discriminator_forward.4} parent=31 // pred_check
                _
              $region45: #{discriminator_forward.4} parent=31 // pred_check_branch
                %199 = sbr.rel (0) target = $region47
              $region46: #{discriminator_forward.4} parent=31 // pred_region
                loop: start=0, step=1, limit=1
                $region48: #{discriminator_forward.4} parent=46 // loop_pre_header
                  _
                $region49: #{discriminator_forward.4} parent=46 // loop_header
                  %s201 = sphi 0, %s205
                  %p202 = scmp.ge.s32.totalorder %s201, 1
                  %s206 = sphi %s174, %s174
                  %s207 = sphi %s169, %s169
                $region50: #{discriminator_forward.4} parent=46 // loop_header_branch
                  %204 = sbr.rel (%p202) target = $region54
                $region51: #{discriminator_forward.4} parent=46 // loop_body
                  _
                $region52: #{discriminator_forward.4} parent=46 // loop_footer
                  %s205 = sadd.s32 1, %s201
                $region53: #{discriminator_forward.4} parent=46 // loop_footer_branch
                  %200 = sbr.rel target = $region49
                $region54: #{discriminator_forward.4} parent=46 // loop_exit
                  _
                loop: start=0, step=1, limit=1
                $region55: #{discriminator_forward.4} parent=46 // loop_pre_header
                  _
                $region56: #{discriminator_forward.4} parent=46 // loop_header
                  %s210 = sphi 0, %s214
                  %p211 = scmp.ge.s32.totalorder %s210, 1
                  %s215 = sphi %s174, %s174
                  %s216 = sphi %s169, %s169
                $region57: #{discriminator_forward.4} parent=46 // loop_header_branch
                  %213 = sbr.rel (%p211) target = $region61
                $region58: #{discriminator_forward.4} parent=46 // loop_body
                  %v217 = vld [vmem:[%s215] sm:$0xf]
                  %218 = vst [vmem:[%s216] sm:$0xf] %v217
                  %v219 = vld [vmem:[%s215 + $0x34] sm:$0xf]
                  %220 = vst [vmem:[%s216 + $0x4] sm:$0xf] %v219
                  %v221 = vld [vmem:[%s215 + $0x68] sm:$0xf]
                  %222 = vst [vmem:[%s216 + $0x8] sm:$0xf] %v221
                  %v223 = vld [vmem:[%s215 + $0x9c] sm:$0xf]
                  %224 = vst [vmem:[%s216 + $0xc] sm:$0xf] %v223
                $region59: #{discriminator_forward.4} parent=46 // loop_footer
                  %s214 = sadd.s32 1, %s210
                $region60: #{discriminator_forward.4} parent=46 // loop_footer_branch
                  %209 = sbr.rel target = $region56
                $region61: #{discriminator_forward.4} parent=46 // loop_exit
                  _
              $region47: #{discriminator_forward.4} parent=31 // pred_fallthru
                _
            $region32: #{discriminator_forward.4} parent=27 // pred_fallthru
              _
            // Predicated region
            $region33: #{discriminator_forward.4} parent=27 // pred_check
              _
            $region34: #{discriminator_forward.4} parent=27 // pred_check_branch
              %180 = sbr.rel (0) target = $region36
            $region35: #{discriminator_forward.4} parent=27 // pred_region
              loop: start=0, step=1, limit=1
              $region37: #{discriminator_forward.4} parent=35 // loop_pre_header
                _
              $region38: #{discriminator_forward.4} parent=35 // loop_header
                %s183 = sphi 0, %s187
                %p184 = scmp.ge.s32.totalorder %s183, 1
                %s188 = sphi %s174, %s174
                %s189 = sphi %s169, %s169
              $region39: #{discriminator_forward.4} parent=35 // loop_header_branch
                %186 = sbr.rel (%p184) target = $region43
              $region40: #{discriminator_forward.4} parent=35 // loop_body
                %v190 = vld [vmem:[%s188] sm:$0xf]
                %191 = vst [vmem:[%s189] sm:$0xf] %v190
                %v192 = vld [vmem:[%s188 + $0x34] sm:$0xf]
                %193 = vst [vmem:[%s189 + $0x4] sm:$0xf] %v192
                %v194 = vld [vmem:[%s188 + $0x68] sm:$0xf]
                %195 = vst [vmem:[%s189 + $0x8] sm:$0xf] %v194
                %v196 = vld [vmem:[%s188 + $0x9c] sm:$0xf]
                %197 = vst [vmem:[%s189 + $0xc] sm:$0xf] %v196
              $region41: #{discriminator_forward.4} parent=35 // loop_footer
                %s187 = sadd.s32 1, %s183
              $region42: #{discriminator_forward.4} parent=35 // loop_footer_branch
                %182 = sbr.rel target = $region38
              $region43: #{discriminator_forward.4} parent=35 // loop_exit
                _
            $region36: #{discriminator_forward.4} parent=27 // pred_fallthru
              _
          $region28: #{discriminator_forward.4} parent=23 // pred_fallthru
            _
          %225 = vnop
        $region24: #{discriminator_forward.4} parent=19 // pred_fallthru
          _
        // Predicated region
        $region62: #{discriminator_forward.4} parent=19 // pred_check
          %p226 = pneg %p78
        $region63: #{discriminator_forward.4} parent=19 // pred_check_branch
          %228 = sbr.rel (%p226) target = $region65
        $region64: #{discriminator_forward.4} parent=19 // pred_region
          %s229 = smul.u32 16, %s18
          %p230 = scmp.lt.s32.totalorder %s229, 207
          %s231 = scalar_select %p230, %s229, 207
          %p232 = scmp.lt.s32.totalorder %s17, 0
          %s233 = scalar_select %p232, %s17, 0
          %s234 = sadd.s32 %s233, %s231
          %s235 = smul.addr %s234, 4
          %s236 = scalar_lea.vmem %s1, %s235
          %s237 = smul.u32 16, %s18
        $region65: #{discriminator_forward.4} parent=19 // pred_fallthru
          _
      $region20: #{discriminator_forward.4} parent=5 // pred_fallthru
        _
      %p238 = scmp.le.s32.totalorder 1, %s9
      %p239 = scmp.lt.s32.totalorder %s9, 14
      %p240 = pnand %p238, %p239
      %p241 = pneg %p240
      // Predicated region
      $region66: #{discriminator_forward.4} parent=5 // pred_check
        _
      $region67: #{discriminator_forward.4} parent=5 // pred_check_branch
        %243 = sbr.rel (%p240) target = $region69
      $region68: #{discriminator_forward.4} parent=5 // pred_region
        %s244 = ssub.s32 %s9, 1
        %s245 = sand.u32 %s43, 1
        %s246 = sand.u32 %s43, 1
        %s247 = smul.addr %s246, 16
        %s248 = scalar_lea.vmem [#allocation3], %s247
        // Predicated region
        $region70: #{discriminator_forward.4} parent=68 // pred_check
          %p249 = pneg %p56
        $region71: #{discriminator_forward.4} parent=68 // pred_check_branch
          %251 = sbr.rel (%p249) target = $region73
        $region72: #{discriminator_forward.4} parent=68 // pred_region
          _
        $region73: #{discriminator_forward.4} parent=68 // pred_fallthru
          _
        %s252 = sand.u32 %s43, 1
        %s253 = sand.u32 %s43, 1
        %s254 = smul.addr %s253, 16
        %s255 = scalar_lea.vmem [#allocation3], %s254
        %p256 = pneg %p56
        %p257 = pneg %p53
        %s258 = smul.u32 16, %s21
        %p259 = scmp.lt.s32.totalorder %s258, 207
        %s260 = scalar_select %p259, %s258, 207
        %p261 = scmp.lt.s32.totalorder %s20, 0
        %s262 = scalar_select %p261, %s20, 0
        %s263 = sadd.s32 %s262, %s260
        %s264 = smul.addr %s263, 4
        %s265 = scalar_lea.vmem %s1, %s264
        %p266 = pneg %p84
        %p267 = pneg %p81
        %p268 = scmp.lt.s32.totalorder %s20, 0
        %s269 = scalar_select %p268, %s20, 0
        %s270 = scalar_lea.vmem %s2, %s269
        %p271 = pneg %p110
        %p272 = pneg %p107
        %p273 = pneg %p138
        %p274 = pneg %p135
        %s275 = smul.u32 4, %s19
        %p276 = scmp.lt.s32.totalorder %s275, 3
        %s277 = scalar_select %p276, %s275, 3
        %p278 = scmp.lt.s32.totalorder %s20, 0
        %s279 = scalar_select %p278, %s20, 0
        %s280 = sadd.s32 %s279, %s277
        %s281 = smul.addr %s280, 8
        %s282 = scalar_lea.vmem %s3, %s281
        %s283 = smul.u32 4, %s19
        %s284 = smul.u32 16, %s21
        %p285 = scmp.lt.s32.totalorder %s284, 207
        %s286 = scalar_select %p285, %s284, 207
        %p287 = scmp.lt.s32.totalorder %s20, 0
        %s288 = scalar_select %p287, %s20, 0
        %s289 = sadd.s32 %s288, %s286
        %s290 = smul.addr %s289, 4
        %s291 = scalar_lea.vmem %s1, %s290
        %s292 = smul.u32 16, %s21
        %p293 = scmp.lt.s32.totalorder %s20, 0
        %s294 = scalar_select %p293, %s20, 0
        %s295 = scalar_lea.vmem %s2, %s294
        %s296 = smul.u32 4, %s19
        %p297 = scmp.lt.s32.totalorder %s296, 3
        %s298 = scalar_select %p297, %s296, 3
        %p299 = scmp.lt.s32.totalorder %s20, 0
        %s300 = scalar_select %p299, %s20, 0
        %s301 = sadd.s32 %s300, %s298
        %s302 = smul.addr %s301, 8
        %s303 = scalar_lea.vmem %s3, %s302
        %s304 = smul.u32 4, %s19
        %p306 = scmp.eq.s32.totalorder %s21, 0
        // Predicated region
        $region74: #{discriminator_forward.4} parent=68 // pred_check
          %p307 = pneg %p306
        $region75: #{discriminator_forward.4} parent=68 // pred_check_branch
          %309 = sbr.rel (%p307) target = $region77
        $region76: #{discriminator_forward.4} parent=68 // pred_region
          %310 = vst [vmem:[#allocation2] sm:$0xff] 0.0
          %311 = vst [vmem:[#allocation2 + $0x8] sm:$0xff] 0.0
          %312 = vst [vmem:[#allocation2 + $0x10] sm:$0xff] 0.0
          %313 = vst [vmem:[#allocation2 + $0x18] sm:$0xff] 0.0
        $region77: #{discriminator_forward.4} parent=68 // pred_fallthru
          _
        %v314 = vld [vmem:[#allocation2] sm:$0xff]
        %v315 = vld [vmem:[#allocation2 + $0x8] sm:$0xff]
        %v316 = vld [vmem:[#allocation2 + $0x10] sm:$0xff]
        %v317 = vld [vmem:[#allocation2 + $0x18] sm:$0xff]
        %v318 = vld [vmem:[%s248] sm:$0xf]
        %v319 = vld [vmem:[%s248 + $0x4] sm:$0xf]
        %v320 = vld [vmem:[%s248 + $0x8] sm:$0xf]
        %v321 = vld [vmem:[%s248 + $0xc] sm:$0xf]
        %v322 = vld [vmem:[%s291] sm:$0xf]
        %v323 = vld [vmem:[%s291 + $0x4] sm:$0xf]
        %v324 = vld [vmem:[%s291 + $0x8] sm:$0xf]
        %v325 = vld [vmem:[%s291 + $0xc] sm:$0xf]
        %v326 = vld [vmem:[%s291 + $0x10] sm:$0xf]
        %v327 = vld [vmem:[%s291 + $0x14] sm:$0xf]
        %v328 = vld [vmem:[%s291 + $0x18] sm:$0xf]
        %v329 = vld [vmem:[%s291 + $0x1c] sm:$0xf]
        %v330 = vld [vmem:[%s291 + $0x20] sm:$0xf]
        %v331 = vld [vmem:[%s291 + $0x24] sm:$0xf]
        %v332 = vld [vmem:[%s291 + $0x28] sm:$0xf]
        %v333 = vld [vmem:[%s291 + $0x2c] sm:$0xf]
        %v334 = vld [vmem:[%s291 + $0x30] sm:$0xf]
        %v335 = vld [vmem:[%s291 + $0x34] sm:$0xf]
        %v336 = vld [vmem:[%s291 + $0x38] sm:$0xf]
        %v337 = vld [vmem:[%s291 + $0x3c] sm:$0xf]
        %v342 = vunpack.c.l.b16 %v318
        %v343 = vunpack.c.l.b16 %v319
        %v344 = vunpack.c.l.b16 %v320
        %v345 = vunpack.c.l.b16 %v321
        %v346 = vpack.c.b16 %v343, %v342
        %v347 = vpack.c.b16 %v345, %v344
        %v366 = vunpack.c.l.b16 %v322
        %v367 = vunpack.c.l.b16 %v323
        %v368 = vunpack.c.l.b16 %v324
        %v369 = vunpack.c.l.b16 %v325
        %v370 = vunpack.c.l.b16 %v326
        %v371 = vunpack.c.l.b16 %v327
        %v372 = vunpack.c.l.b16 %v328
        %v373 = vunpack.c.l.b16 %v329
        %v374 = vunpack.c.l.b16 %v330
        %v375 = vunpack.c.l.b16 %v331
        %v376 = vunpack.c.l.b16 %v332
        %v377 = vunpack.c.l.b16 %v333
        %v378 = vunpack.c.l.b16 %v334
        %v379 = vunpack.c.l.b16 %v335
        %v380 = vunpack.c.l.b16 %v336
        %v381 = vunpack.c.l.b16 %v337
        %v382 = vpack.c.b16 %v367, %v366
        %v383 = vpack.c.b16 %v369, %v368
        %v384 = vpack.c.b16 %v371, %v370
        %v385 = vpack.c.b16 %v373, %v372
        %v386 = vpack.c.b16 %v375, %v374
        %v387 = vpack.c.b16 %v377, %v376
        %v388 = vpack.c.b16 %v379, %v378
        %v389 = vpack.c.b16 %v381, %v380
        %398 = vmatprep.subr.bf16.mxu0 0
        %399 = vmatpush1.bf16.msra.mxu0 %v382
        %400 = vmatprep.subr.bf16.mxu0 0
        %401 = vmatpush1.bf16.msra.mxu0 %v383
        %402 = vmatprep.subr.bf16.mxu0 0
        %403 = vmatpush1.bf16.msra.mxu0 %v384
        %404 = vmatprep.subr.bf16.mxu0 0
        %405 = vmatpush1.bf16.msra.mxu0 %v385
        %406 = vmatprep.subr.bf16.mxu0 0
        %407 = vmatpush1.bf16.msra.mxu0 %v386
        %408 = vmatprep.subr.bf16.mxu0 0
        %409 = vmatpush1.bf16.msra.mxu0 %v387
        %410 = vmatprep.subr.bf16.mxu0 0
        %411 = vmatpush1.bf16.msra.mxu0 %v388
        %412 = vmatprep.subr.bf16.mxu0 0
        %413 = vmatpush1.bf16.msra.mxu0 %v389
        %414 = vmatprep.subr.bf16.mxu0 0
        %415 = vmatpush1.bf16.msra.mxu0 0
        %416 = vmatprep.subr.bf16.mxu0 0
        %417 = vmatpush1.bf16.msra.mxu0 0
        %418 = vmatprep.subr.bf16.mxu0 0
        %419 = vmatpush1.bf16.msra.mxu0 0
        %420 = vmatprep.subr.bf16.mxu0 0
        %421 = vmatpush1.bf16.msra.mxu0 0
        %422 = vmatprep.subr.bf16.mxu0 0
        %423 = vmatpush1.bf16.msra.mxu0 0
        %424 = vmatprep.subr.bf16.mxu0 0
        %425 = vmatpush1.bf16.msra.mxu0 0
        %426 = vmatprep.subr.bf16.mxu0 0
        %427 = vmatpush1.bf16.msra.mxu0 0
        %428 = vmatprep.subr.bf16.mxu0 0
        %429 = vmatpush1.bf16.msra.mxu0 0
        %430 = vmatprep.mubr.bf16.mxu0 0
        %431 = vmatmul.mubr.bf16.gmra.mrb[0].mxu0 %v346
        %v432 = vpop.f32.mrb[0].mxu0
        %v433 = vadd.f32 0.0, %v432
        %v434 = vpop.f32.mrb[0].mxu0
        %v435 = vpop.f32.mrb[0].mxu0
        %v436 = vadd.f32 0.0, %v435
        %v437 = vpop.f32.mrb[0].mxu0
        %438 = vmatprep.mubr.bf16.mxu0 0
        %439 = vmatmul.mubr.bf16.gmra.mrb[0].mxu0 %v347
        %v440 = vpop.f32.mrb[0].mxu0
        %v441 = vadd.f32 0.0, %v440
        %v442 = vpop.f32.mrb[0].mxu0
        %v443 = vpop.f32.mrb[0].mxu0
        %v444 = vadd.f32 0.0, %v443
        %v445 = vpop.f32.mrb[0].mxu0
        %446 = vdwg.mxu0
        %v447 = vadd.f32 %v314, %v433
        %v448 = vadd.f32 %v315, %v436
        %v449 = vadd.f32 %v316, %v441
        %v450 = vadd.f32 %v317, %v444
        %451 = vst [vmem:[#allocation2] sm:$0xff] %v447
        %452 = vst [vmem:[#allocation2 + $0x8] sm:$0xff] %v448
        %453 = vst [vmem:[#allocation2 + $0x10] sm:$0xff] %v449
        %454 = vst [vmem:[#allocation2 + $0x18] sm:$0xff] %v450
        %p455 = scmp.eq.s32.totalorder %s21, 12
        // Predicated region
        $region78: #{discriminator_forward.4} parent=68 // pred_check
          %p456 = pneg %p455
        $region79: #{discriminator_forward.4} parent=68 // pred_check_branch
          %458 = sbr.rel (%p456) target = $region81
        $region80: #{discriminator_forward.4} parent=68 // pred_region
          %v459 = vld [vmem:[#allocation2] sm:$0xff]
          %v460 = vld [vmem:[#allocation2 + $0x8] sm:$0xff]
          %v461 = vld [vmem:[#allocation2 + $0x10] sm:$0xff]
          %v462 = vld [vmem:[#allocation2 + $0x18] sm:$0xff]
          %v463 = vld [vmem:[%s295] sm:$0x1]
          %v465 = vlaneseq
          %v466 = vshrl.u32 %v465, 7
          %v467 = vsub.s32 0, %v466
          %v468 = vrot.slane %v463, %v467
          %v470 = vadd.f32 %v459, %v468
          %v471 = vadd.f32 %v460, %v468
          %v472 = vadd.f32 %v461, %v468
          %v473 = vadd.f32 %v462, %v468
          %v474 = vmax.f32 %v470, 0.0
          %v475 = vmax.f32 %v471, 0.0
          %v476 = vmax.f32 %v472, 0.0
          %v477 = vmax.f32 %v473, 0.0
          %478 = vst [vmem:[%s303] sm:$0xff] %v474
          %479 = vst [vmem:[%s303 + $0x8] sm:$0xff] %v475
          %480 = vst [vmem:[%s303 + $0x10] sm:$0xff] %v476
          %481 = vst [vmem:[%s303 + $0x18] sm:$0xff] %v477
        $region81: #{discriminator_forward.4} parent=68 // pred_fallthru
          _
        %s482 = smul.u32 4, %s19
        %p483 = scmp.lt.s32.totalorder %s482, 3
        %s484 = scalar_select %p483, %s482, 3
        %p485 = scmp.lt.s32.totalorder %s20, 0
        %s486 = scalar_select %p485, %s20, 0
        %s487 = sadd.s32 %s486, %s484
        %s488 = smul.addr %s487, 8
        %s489 = scalar_lea.vmem %s3, %s488
        // Predicated region
        $region82: #{discriminator_forward.4} parent=68 // pred_check
          %p490 = pneg %p135
        $region83: #{discriminator_forward.4} parent=68 // pred_check_branch
          %492 = sbr.rel (%p490) target = $region85
        $region84: #{discriminator_forward.4} parent=68 // pred_region
          %s493 = smul.u32 4, %s19
        $region85: #{discriminator_forward.4} parent=68 // pred_fallthru
          _
        // Predicated region
        $region86: #{discriminator_forward.4} parent=68 // pred_check
          %p494 = pneg %p135
        $region87: #{discriminator_forward.4} parent=68 // pred_check_branch
          %496 = sbr.rel (%p494) target = $region89
        $region88: #{discriminator_forward.4} parent=68 // pred_region
          %s497 = smul.u32 4, %s19
          %p498 = scmp.lt.s32.totalorder %s497, 3
          %s499 = scalar_select %p498, %s497, 3
          %p500 = scmp.lt.s32.totalorder %s20, 0
          %s501 = scalar_select %p500, %s20, 0
          %s502 = sadd.s32 %s501, %s499
          %s503 = smul.addr %s502, 8
          %s504 = scalar_lea.vmem %s3, %s503
        $region89: #{discriminator_forward.4} parent=68 // pred_fallthru
          _
      $region69: #{discriminator_forward.4} parent=5 // pred_fallthru
        _
      %p505 = scmp.le.s32.totalorder 2, %s9
      // Predicated region
      $region90: #{discriminator_forward.4} parent=5 // pred_check
        %p506 = pneg %p505
      $region91: #{discriminator_forward.4} parent=5 // pred_check_branch
        %508 = sbr.rel (%p506) target = $region93
      $region92: #{discriminator_forward.4} parent=5 // pred_region
        %s509 = ssub.s32 %s9, 2
      $region93: #{discriminator_forward.4} parent=5 // pred_fallthru
        _
    $region6: #{discriminator_forward.4} parent=1 // loop_footer
      %s13 = sadd.s32 1, %s9
    $region7: #{discriminator_forward.4} parent=1 // loop_footer_branch
      %8 = sbr.rel target = $region3
    $region8: #{discriminator_forward.4} parent=1 // loop_exit
      _

// kernel: discriminator_forward.5
$region0: #{discriminator_forward.5}
  #allocation0 [shape = 'u32[]', space=smem, size = 0x4, offset = 0x4, fixed_abs, tag = 'smem constant byte address 0x4 - core index']
  #allocation1 [shape = 'u32[144,128]{1,0:T(1,128)}', space=vmem, size = 0x12000, scoped, tag = 'internal scratch']
  #allocation2 [shape = 'f32[16,256]{1,0:T(8,128)}', space=vmem, size = 0x4000, scoped, tag = 'scratch operand']
  %s0 = inlined_call_operand.vmem [shape: bf16[16,3200], index: 0, kind: input, shape index: {}]
  %s1 = inlined_call_operand.vmem [shape: bf16[3200,256], index: 1, kind: input, shape index: {}]
  %s2 = inlined_call_operand.vmem [shape: f32[1,256], index: 2, kind: input, shape index: {}]
  %s3 = inlined_call_operand.vmem [shape: f32[16,256], index: 3, kind: output, shape index: {}]
  %s4 = sld [smem:[#allocation0]]
  $region94: #{discriminator_forward.5} parent=0
    _
  %s6 = ssub.s32 1, %s4
  %s7 = scalar_select 0, %s6, %s4
  $region1: #{discriminator_forward.5} parent=0
    #allocation3 [shape = 'u8[8192]{0}', space=vmem, size = 0x2000, scoped, tag = 'input window, operand 0']
    loop: start=0, step=1, limit=27
    $region2: #{discriminator_forward.5} parent=1 // loop_pre_header
      _
    $region3: #{discriminator_forward.5} parent=1 // loop_header
      %s9 = sphi 0, %s13
      %p10 = scmp.ge.s32.totalorder %s9, 27
      %s16 = sphi 0, %s35
      %s17 = sphi 0, %s31
      %s18 = sphi 0, %s27
      %s19 = sphi 0, %s16
      %s20 = sphi 0, %s17
      %s21 = sphi 0, %s18
      %s22 = sphi 0, %s19
      %s23 = sphi 0, %s20
      %s24 = sphi 0, %s21
      %s40 = sphi 0, %s42
      %s43 = sphi 0, %s40
      %s44 = sphi 0, %s43
      %s60 = sphi 0, %s44
      %s68 = sphi 0, %s70
      %s71 = sphi 0, %s68
      %s72 = sphi 0, %s71
      %s88 = sphi 0, %s72
      %s94 = sphi 0, %s96
      %s97 = sphi 0, %s94
      %s98 = sphi 0, %s97
      %s114 = sphi 0, %s98
      %s122 = sphi 0, %s124
      %s125 = sphi 0, %s122
      %s126 = sphi 0, %s125
      %s142 = sphi 0, %s126
    $region4: #{discriminator_forward.5} parent=1 // loop_header_branch
      %12 = sbr.rel (%p10) target = $region8
    $region5: #{discriminator_forward.5} parent=1 // loop_body
      %s14 = ssub.s32 %s9, 1
      %s15 = ssub.s32 %s9, 2
      %s25 = sadd.s32 1, %s18
      %p26 = scmp.ge.s32.totalorder %s25, 25
      %s27 = scalar_select %p26, 0, %s25
      %s28 = sadd.s32 1, %s17
      %s29 = scalar_select %p26, %s28, %s17
      %p30 = scmp.ge.s32.totalorder %s29, 1
      %s31 = scalar_select %p30, 0, %s29
      %s32 = sadd.s32 1, %s16
      %s33 = scalar_select %p30, %s32, %s16
      %p34 = scmp.ge.s32.totalorder %s33, 1
      %s35 = scalar_select %p34, 0, %s33
      %s36 = ssub.s32 %s16, %s35
      %s37 = ssub.s32 %s18, %s27
      %s38 = sor.u32 %s36, %s37
      %p39 = scmp.eq.s32.totalorder %s38, 0
      %s41 = sadd.s32 %s40, 1
      %s42 = scalar_select %p39, %s40, %s41
      %p45 = pneg %p39
      %p46 = scmp.eq.s32.totalorder %s9, 24
      %p47 = por %p45, %p46
      %p48 = scmp.ne.s32.totalorder %s40, %s43
      %p49 = scmp.eq.s32.totalorder %s9, 0
      %p50 = por %p48, %p49
      %p51 = scmp.ne.s32.totalorder %s40, %s43
      %p52 = scmp.eq.s32.totalorder %s14, 24
      %p53 = por %p51, %p52
      %p54 = scmp.ne.s32.totalorder %s43, %s44
      %p55 = scmp.eq.s32.totalorder %s14, 0
      %p56 = por %p54, %p55
      %p57 = scmp.ne.s32.totalorder %s43, %s44
      %p58 = scmp.eq.s32.totalorder %s15, 24
      %p59 = por %p57, %p58
      %p61 = scmp.ne.s32.totalorder %s44, %s60
      %p62 = scmp.eq.s32.totalorder %s15, 0
      %p63 = por %p61, %p62
      %s64 = ssub.s32 %s18, %s27
      %s65 = ssub.s32 %s17, %s31
      %s66 = sor.u32 %s64, %s65
      %p67 = scmp.eq.s32.totalorder %s66, 0
      %s69 = sadd.s32 %s68, 1
      %s70 = scalar_select %p67, %s68, %s69
      %p73 = pneg %p67
      %p74 = scmp.eq.s32.totalorder %s9, 24
      %p75 = por %p73, %p74
      %p76 = scmp.ne.s32.totalorder %s68, %s71
      %p77 = scmp.eq.s32.totalorder %s9, 0
      %p78 = por %p76, %p77
      %p79 = scmp.ne.s32.totalorder %s68, %s71
      %p80 = scmp.eq.s32.totalorder %s14, 24
      %p81 = por %p79, %p80
      %p82 = scmp.ne.s32.totalorder %s71, %s72
      %p83 = scmp.eq.s32.totalorder %s14, 0
      %p84 = por %p82, %p83
      %p85 = scmp.ne.s32.totalorder %s71, %s72
      %p86 = scmp.eq.s32.totalorder %s15, 24
      %p87 = por %p85, %p86
      %p89 = scmp.ne.s32.totalorder %s72, %s88
      %p90 = scmp.eq.s32.totalorder %s15, 0
      %p91 = por %p89, %p90
      %s92 = ssub.s32 %s17, %s31
      %p93 = scmp.eq.s32.totalorder %s92, 0
      %s95 = sadd.s32 %s94, 1
      %s96 = scalar_select %p93, %s94, %s95
      %p99 = pneg %p93
      %p100 = scmp.eq.s32.totalorder %s9, 24
      %p101 = por %p99, %p100
      %p102 = scmp.ne.s32.totalorder %s94, %s97
      %p103 = scmp.eq.s32.totalorder %s9, 0
      %p104 = por %p102, %p103
      %p105 = scmp.ne.s32.totalorder %s94, %s97
      %p106 = scmp.eq.s32.totalorder %s14, 24
      %p107 = por %p105, %p106
      %p108 = scmp.ne.s32.totalorder %s97, %s98
      %p109 = scmp.eq.s32.totalorder %s14, 0
      %p110 = por %p108, %p109
      %p111 = scmp.ne.s32.totalorder %s97, %s98
      %p112 = scmp.eq.s32.totalorder %s15, 24
      %p113 = por %p111, %p112
      %p115 = scmp.ne.s32.totalorder %s98, %s114
      %p116 = scmp.eq.s32.totalorder %s15, 0
      %p117 = por %p115, %p116
      %s118 = ssub.s32 %s16, %s35
      %s119 = ssub.s32 %s17, %s31
      %s120 = sor.u32 %s118, %s119
      %p121 = scmp.eq.s32.totalorder %s120, 0
      %s123 = sadd.s32 %s122, 1
      %s124 = scalar_select %p121, %s122, %s123
      %p127 = pneg %p121
      %p128 = scmp.eq.s32.totalorder %s9, 24
      %p129 = por %p127, %p128
      %p130 = scmp.ne.s32.totalorder %s122, %s125
      %p131 = scmp.eq.s32.totalorder %s9, 0
      %p132 = por %p130, %p131
      %p133 = scmp.ne.s32.totalorder %s122, %s125
      %p134 = scmp.eq.s32.totalorder %s14, 24
      %p135 = por %p133, %p134
      %p136 = scmp.ne.s32.totalorder %s125, %s126
      %p137 = scmp.eq.s32.totalorder %s14, 0
      %p138 = por %p136, %p137
      %p139 = scmp.ne.s32.totalorder %s125, %s126
      %p140 = scmp.eq.s32.totalorder %s15, 24
      %p141 = por %p139, %p140
      %p143 = scmp.ne.s32.totalorder %s126, %s142
      %p144 = scmp.eq.s32.totalorder %s15, 0
      %p145 = por %p143, %p144
      %p146 = scmp.le.s32.totalorder 1, %s9
      %p147 = scmp.lt.s32.totalorder %s9, 26
      %p148 = pnand %p146, %p147
      %p149 = pneg %p148
      // Predicated region
      $region9: #{discriminator_forward.5} parent=5 // pred_check
        _
      $region10: #{discriminator_forward.5} parent=5 // pred_check_branch
        %151 = sbr.rel (%p148) target = $region12
      $region11: #{discriminator_forward.5} parent=5 // pred_region
        %s152 = ssub.s32 %s9, 1
        // Predicated region
        $region13: #{discriminator_forward.5} parent=11 // pred_check
          %p153 = pneg %p110
        $region14: #{discriminator_forward.5} parent=11 // pred_check_branch
          %155 = sbr.rel (%p153) target = $region16
        $region15: #{discriminator_forward.5} parent=11 // pred_region
          %s156 = smul.u32 2, %s20
          %p157 = scmp.lt.s32.totalorder %s156, 1
          %s158 = scalar_select %p157, %s156, 1
          %s159 = scalar_lea.vmem %s2, %s158
          %s160 = smul.u32 2, %s20
        $region16: #{discriminator_forward.5} parent=11 // pred_fallthru
          _
      $region12: #{discriminator_forward.5} parent=5 // pred_fallthru
        _
      %p161 = scmp.lt.s32.totalorder %s9, 25
      // Predicated region
      $region17: #{discriminator_forward.5} parent=5 // pred_check
        %p162 = pneg %p161
      $region18: #{discriminator_forward.5} parent=5 // pred_check_branch
        %164 = sbr.rel (%p162) target = $region20
      $region19: #{discriminator_forward.5} parent=5 // pred_region
        // Predicated region
        $region21: #{discriminator_forward.5} parent=19 // pred_check
          %p165 = pneg %p50
        $region22: #{discriminator_forward.5} parent=19 // pred_check_branch
          %167 = sbr.rel (%p165) target = $region24
        $region23: #{discriminator_forward.5} parent=19 // pred_region
          %s168 = sand.u32 %s40, 1
          %s169 = sand.u32 %s40, 1
          %s170 = smul.addr %s169, 8
          %s171 = scalar_lea.vmem [#allocation3], %s170
          %s172 = smul.u32 2, %s16
          %s173 = smul.addr %s172, 25
          %s174 = sadd.s32 %s18, %s173
          %s175 = smul.addr %s174, 4
          %s176 = scalar_lea.vmem %s0, %s175
          // Predicated region
          $region25: #{discriminator_forward.5} parent=23 // pred_check
            _
          $region26: #{discriminator_forward.5} parent=23 // pred_check_branch
            %178 = sbr.rel (0) target = $region28
          $region27: #{discriminator_forward.5} parent=23 // pred_region
            // Predicated region
            $region29: #{discriminator_forward.5} parent=27 // pred_check
              _
            $region30: #{discriminator_forward.5} parent=27 // pred_check_branch
              %180 = sbr.rel target = $region32
            $region31: #{discriminator_forward.5} parent=27 // pred_region
              // Predicated region
              $region44: #{discriminator_forward.5} parent=31 // pred_check
                _
              $region45: #{discriminator_forward.5} parent=31 // pred_check_branch
                %197 = sbr.rel (0) target = $region47
              $region46: #{discriminator_forward.5} parent=31 // pred_region
                loop: start=0, step=1, limit=1
                $region48: #{discriminator_forward.5} parent=46 // loop_pre_header
                  _
                $region49: #{discriminator_forward.5} parent=46 // loop_header
                  %s199 = sphi 0, %s203
                  %p200 = scmp.ge.s32.totalorder %s199, 1
                  %s204 = sphi %s176, %s176
                  %s205 = sphi %s171, %s171
                $region50: #{discriminator_forward.5} parent=46 // loop_header_branch
                  %202 = sbr.rel (%p200) target = $region54
                $region51: #{discriminator_forward.5} parent=46 // loop_body
                  _
                $region52: #{discriminator_forward.5} parent=46 // loop_footer
                  %s203 = sadd.s32 1, %s199
                $region53: #{discriminator_forward.5} parent=46 // loop_footer_branch
                  %198 = sbr.rel target = $region49
                $region54: #{discriminator_forward.5} parent=46 // loop_exit
                  _
                loop: start=0, step=1, limit=1
                $region55: #{discriminator_forward.5} parent=46 // loop_pre_header
                  _
                $region56: #{discriminator_forward.5} parent=46 // loop_header
                  %s208 = sphi 0, %s212
                  %p209 = scmp.ge.s32.totalorder %s208, 1
                  %s213 = sphi %s176, %s176
                  %s214 = sphi %s171, %s171
                $region57: #{discriminator_forward.5} parent=46 // loop_header_branch
                  %211 = sbr.rel (%p209) target = $region61
                $region58: #{discriminator_forward.5} parent=46 // loop_body
                  %v215 = vld [vmem:[%s213] sm:$0xf]
                  %216 = vst [vmem:[%s214] sm:$0xf] %v215
                  %v217 = vld [vmem:[%s213 + $0x64] sm:$0xf]
                  %218 = vst [vmem:[%s214 + $0x4] sm:$0xf] %v217
                $region59: #{discriminator_forward.5} parent=46 // loop_footer
                  %s212 = sadd.s32 1, %s208
                $region60: #{discriminator_forward.5} parent=46 // loop_footer_branch
                  %207 = sbr.rel target = $region56
                $region61: #{discriminator_forward.5} parent=46 // loop_exit
                  _
              $region47: #{discriminator_forward.5} parent=31 // pred_fallthru
                _
            $region32: #{discriminator_forward.5} parent=27 // pred_fallthru
              _
            // Predicated region
            $region33: #{discriminator_forward.5} parent=27 // pred_check
              _
            $region34: #{discriminator_forward.5} parent=27 // pred_check_branch
              %182 = sbr.rel (0) target = $region36
            $region35: #{discriminator_forward.5} parent=27 // pred_region
              loop: start=0, step=1, limit=1
              $region37: #{discriminator_forward.5} parent=35 // loop_pre_header
                _
              $region38: #{discriminator_forward.5} parent=35 // loop_header
                %s185 = sphi 0, %s189
                %p186 = scmp.ge.s32.totalorder %s185, 1
                %s190 = sphi %s176, %s176
                %s191 = sphi %s171, %s171
              $region39: #{discriminator_forward.5} parent=35 // loop_header_branch
                %188 = sbr.rel (%p186) target = $region43
              $region40: #{discriminator_forward.5} parent=35 // loop_body
                %v192 = vld [vmem:[%s190] sm:$0xf]
                %193 = vst [vmem:[%s191] sm:$0xf] %v192
                %v194 = vld [vmem:[%s190 + $0x64] sm:$0xf]
                %195 = vst [vmem:[%s191 + $0x4] sm:$0xf] %v194
              $region41: #{discriminator_forward.5} parent=35 // loop_footer
                %s189 = sadd.s32 1, %s185
              $region42: #{discriminator_forward.5} parent=35 // loop_footer_branch
                %184 = sbr.rel target = $region38
              $region43: #{discriminator_forward.5} parent=35 // loop_exit
                _
            $region36: #{discriminator_forward.5} parent=27 // pred_fallthru
              _
          $region28: #{discriminator_forward.5} parent=23 // pred_fallthru
            _
          %219 = vnop
        $region24: #{discriminator_forward.5} parent=19 // pred_fallthru
          _
        // Predicated region
        $region62: #{discriminator_forward.5} parent=19 // pred_check
          %p220 = pneg %p78
        $region63: #{discriminator_forward.5} parent=19 // pred_check_branch
          %222 = sbr.rel (%p220) target = $region65
        $region64: #{discriminator_forward.5} parent=19 // pred_region
          %s223 = smul.u32 16, %s18
          %s224 = smul.u32 2, %s17
          %p225 = scmp.lt.s32.totalorder %s223, 399
          %s226 = scalar_select %p225, %s223, 399
          %p227 = scmp.lt.s32.totalorder %s224, 1
          %s228 = scalar_select %p227, %s224, 1
          %s229 = smul.addr %s226, 2
          %s230 = sadd.s32 %s228, %s229
          %s231 = smul.addr %s230, 4
          %s232 = scalar_lea.vmem %s1, %s231
          %s233 = smul.u32 16, %s18
          %s234 = smul.u32 2, %s17
        $region65: #{discriminator_forward.5} parent=19 // pred_fallthru
          _
      $region20: #{discriminator_forward.5} parent=5 // pred_fallthru
        _
      %p235 = scmp.le.s32.totalorder 1, %s9
      %p236 = scmp.lt.s32.totalorder %s9, 26
      %p237 = pnand %p235, %p236
      %p238 = pneg %p237
      // Predicated region
      $region66: #{discriminator_forward.5} parent=5 // pred_check
        _
      $region67: #{discriminator_forward.5} parent=5 // pred_check_branch
        %240 = sbr.rel (%p237) target = $region69
      $region68: #{discriminator_forward.5} parent=5 // pred_region
        %s241 = ssub.s32 %s9, 1
        %s242 = sand.u32 %s43, 1
        %s243 = sand.u32 %s43, 1
        %s244 = smul.addr %s243, 8
        %s245 = scalar_lea.vmem [#allocation3], %s244
        // Predicated region
        $region70: #{discriminator_forward.5} parent=68 // pred_check
          %p246 = pneg %p56
        $region71: #{discriminator_forward.5} parent=68 // pred_check_branch
          %248 = sbr.rel (%p246) target = $region73
        $region72: #{discriminator_forward.5} parent=68 // pred_region
          _
        $region73: #{discriminator_forward.5} parent=68 // pred_fallthru
          _
        %s249 = sand.u32 %s43, 1
        %s250 = sand.u32 %s43, 1
        %s251 = smul.addr %s250, 8
        %s252 = scalar_lea.vmem [#allocation3], %s251
        %p253 = pneg %p56
        %p254 = pneg %p53
        %s255 = smul.u32 16, %s21
        %s256 = smul.u32 2, %s20
        %p257 = scmp.lt.s32.totalorder %s255, 399
        %s258 = scalar_select %p257, %s255, 399
        %p259 = scmp.lt.s32.totalorder %s256, 1
        %s260 = scalar_select %p259, %s256, 1
        %s261 = smul.addr %s258, 2
        %s262 = sadd.s32 %s260, %s261
        %s263 = smul.addr %s262, 4
        %s264 = scalar_lea.vmem %s1, %s263
        %p265 = pneg %p84
        %p266 = pneg %p81
        %s267 = smul.u32 2, %s20
        %p268 = scmp.lt.s32.totalorder %s267, 1
        %s269 = scalar_select %p268, %s267, 1
        %s270 = scalar_lea.vmem %s2, %s269
        %p271 = pneg %p110
        %p272 = pneg %p107
        %p273 = pneg %p138
        %p274 = pneg %p135
        %s275 = smul.u32 2, %s19
        %s276 = smul.u32 2, %s20
        %p277 = scmp.lt.s32.totalorder %s275, 1
        %s278 = scalar_select %p277, %s275, 1
        %p279 = scmp.lt.s32.totalorder %s276, 1
        %s280 = scalar_select %p279, %s276, 1
        %s281 = smul.addr %s278, 2
        %s282 = sadd.s32 %s280, %s281
        %s283 = smul.addr %s282, 8
        %s284 = scalar_lea.vmem %s3, %s283
        %s285 = smul.u32 2, %s19
        %s286 = smul.u32 16, %s21
        %s287 = smul.u32 2, %s20
        %p288 = scmp.lt.s32.totalorder %s286, 399
        %s289 = scalar_select %p288, %s286, 399
        %p290 = scmp.lt.s32.totalorder %s287, 1
        %s291 = scalar_select %p290, %s287, 1
        %s292 = smul.addr %s289, 2
        %s293 = sadd.s32 %s291, %s292
        %s294 = smul.addr %s293, 4
        %s295 = scalar_lea.vmem %s1, %s294
        %s296 = smul.u32 16, %s21
        %s297 = smul.u32 2, %s20
        %s298 = smul.u32 2, %s20
        %p299 = scmp.lt.s32.totalorder %s298, 1
        %s300 = scalar_select %p299, %s298, 1
        %s301 = scalar_lea.vmem %s2, %s300
        %s302 = smul.u32 2, %s20
        %s303 = smul.u32 2, %s19
        %s304 = smul.u32 2, %s20
        %p305 = scmp.lt.s32.totalorder %s303, 1
        %s306 = scalar_select %p305, %s303, 1
        %p307 = scmp.lt.s32.totalorder %s304, 1
        %s308 = scalar_select %p307, %s304, 1
        %s309 = smul.addr %s306, 2
        %s310 = sadd.s32 %s308, %s309
        %s311 = smul.addr %s310, 8
        %s312 = scalar_lea.vmem %s3, %s311
        %s313 = smul.u32 2, %s19
        %s314 = smul.u32 2, %s20
        %p316 = scmp.eq.s32.totalorder %s21, 0
        // Predicated region
        $region74: #{discriminator_forward.5} parent=68 // pred_check
          %p317 = pneg %p316
        $region75: #{discriminator_forward.5} parent=68 // pred_check_branch
          %319 = sbr.rel (%p317) target = $region77
        $region76: #{discriminator_forward.5} parent=68 // pred_region
          %320 = vst [vmem:[#allocation2] sm:$0xff] 0.0
          %321 = vst [vmem:[#allocation2 + $0x8] sm:$0xff] 0.0
          %322 = vst [vmem:[#allocation2 + $0x10] sm:$0xff] 0.0
          %323 = vst [vmem:[#allocation2 + $0x18] sm:$0xff] 0.0
        $region77: #{discriminator_forward.5} parent=68 // pred_fallthru
          _
        %v324 = vld [vmem:[#allocation2] sm:$0xff]
        %v325 = vld [vmem:[#allocation2 + $0x8] sm:$0xff]
        %v326 = vld [vmem:[#allocation2 + $0x10] sm:$0xff]
        %v327 = vld [vmem:[#allocation2 + $0x18] sm:$0xff]
        %v328 = vld [vmem:[%s245] sm:$0xf]
        %v329 = vld [vmem:[%s245 + $0x4] sm:$0xf]
        %v330 = vld [vmem:[%s295] sm:$0xff]
        %v331 = vld [vmem:[%s295 + $0x8] sm:$0xff]
        %v332 = vld [vmem:[%s295 + $0x10] sm:$0xff]
        %v333 = vld [vmem:[%s295 + $0x18] sm:$0xff]
        %v334 = vld [vmem:[%s295 + $0x20] sm:$0xff]
        %v335 = vld [vmem:[%s295 + $0x28] sm:$0xff]
        %v336 = vld [vmem:[%s295 + $0x30] sm:$0xff]
        %v337 = vld [vmem:[%s295 + $0x38] sm:$0xff]
        %v338 = vld [vmem:[%s295 + $0x40] sm:$0xff]
        %v339 = vld [vmem:[%s295 + $0x48] sm:$0xff]
        %v340 = vld [vmem:[%s295 + $0x50] sm:$0xff]
        %v341 = vld [vmem:[%s295 + $0x58] sm:$0xff]
        %v342 = vld [vmem:[%s295 + $0x60] sm:$0xff]
        %v343 = vld [vmem:[%s295 + $0x68] sm:$0xff]
        %v344 = vld [vmem:[%s295 + $0x70] sm:$0xff]
        %v345 = vld [vmem:[%s295 + $0x78] sm:$0xff]
        %v348 = vunpack.c.l.b16 %v328
        %v349 = vunpack.c.l.b16 %v329
        %v350 = vpack.c.b16 %v349, %v348
        %v368 = vunpack.c.l.b16 %v330
        %v369 = vunpack.c.h.b16 %v330
        %v370 = vunpack.c.l.b16 %v331
        %v371 = vunpack.c.h.b16 %v331
        %v372 = vunpack.c.l.b16 %v332
        %v373 = vunpack.c.h.b16 %v332
        %v374 = vunpack.c.l.b16 %v333
        %v375 = vunpack.c.h.b16 %v333
        %v376 = vunpack.c.l.b16 %v334
        %v377 = vunpack.c.h.b16 %v334
        %v378 = vunpack.c.l.b16 %v335
        %v379 = vunpack.c.h.b16 %v335
        %v380 = vunpack.c.l.b16 %v336
        %v381 = vunpack.c.h.b16 %v336
        %v382 = vunpack.c.l.b16 %v337
        %v383 = vunpack.c.h.b16 %v337
        %v384 = vunpack.c.l.b16 %v338
        %v385 = vunpack.c.h.b16 %v338
        %v386 = vunpack.c.l.b16 %v339
        %v387 = vunpack.c.h.b16 %v339
        %v388 = vunpack.c.l.b16 %v340
        %v389 = vunpack.c.h.b16 %v340
        %v390 = vunpack.c.l.b16 %v341
        %v391 = vunpack.c.h.b16 %v341
        %v392 = vunpack.c.l.b16 %v342
        %v393 = vunpack.c.h.b16 %v342
        %v394 = vunpack.c.l.b16 %v343
        %v395 = vunpack.c.h.b16 %v343
        %v396 = vunpack.c.l.b16 %v344
        %v397 = vunpack.c.h.b16 %v344
        %v398 = vunpack.c.l.b16 %v345
        %v399 = vunpack.c.h.b16 %v345
        %v400 = vpack.c.b16 %v370, %v368
        %v401 = vpack.c.b16 %v371, %v369
        %v402 = vpack.c.b16 %v374, %v372
        %v403 = vpack.c.b16 %v375, %v373
        %v404 = vpack.c.b16 %v378, %v376
        %v405 = vpack.c.b16 %v379, %v377
        %v406 = vpack.c.b16 %v382, %v380
        %v407 = vpack.c.b16 %v383, %v381
        %v408 = vpack.c.b16 %v386, %v384
        %v409 = vpack.c.b16 %v387, %v385
        %v410 = vpack.c.b16 %v390, %v388
        %v411 = vpack.c.b16 %v391, %v389
        %v412 = vpack.c.b16 %v394, %v392
        %v413 = vpack.c.b16 %v395, %v393
        %v414 = vpack.c.b16 %v398, %v396
        %v415 = vpack.c.b16 %v399, %v397
        %432 = vmatprep.subr.bf16.mxu0 %v401
        %433 = vmatpush1.bf16.msra.mxu0 %v400
        %434 = vmatprep.subr.bf16.mxu0 %v403
        %435 = vmatpush1.bf16.msra.mxu0 %v402
        %436 = vmatprep.subr.bf16.mxu0 %v405
        %437 = vmatpush1.bf16.msra.mxu0 %v404
        %438 = vmatprep.subr.bf16.mxu0 %v407
        %439 = vmatpush1.bf16.msra.mxu0 %v406
        %440 = vmatprep.subr.bf16.mxu0 %v409
        %441 = vmatpush1.bf16.msra.mxu0 %v408
        %442 = vmatprep.subr.bf16.mxu0 %v411
        %443 = vmatpush1.bf16.msra.mxu0 %v410
        %444 = vmatprep.subr.bf16.mxu0 %v413
        %445 = vmatpush1.bf16.msra.mxu0 %v412
        %446 = vmatprep.subr.bf16.mxu0 %v415
        %447 = vmatpush1.bf16.msra.mxu0 %v414
        %448 = vmatprep.subr.bf16.mxu0 0
        %449 = vmatpush1.bf16.msra.mxu0 0
        %450 = vmatprep.subr.bf16.mxu0 0
        %451 = vmatpush1.bf16.msra.mxu0 0
        %452 = vmatprep.subr.bf16.mxu0 0
        %453 = vmatpush1.bf16.msra.mxu0 0
        %454 = vmatprep.subr.bf16.mxu0 0
        %455 = vmatpush1.bf16.msra.mxu0 0
        %456 = vmatprep.subr.bf16.mxu0 0
        %457 = vmatpush1.bf16.msra.mxu0 0
        %458 = vmatprep.subr.bf16.mxu0 0
        %459 = vmatpush1.bf16.msra.mxu0 0
        %460 = vmatprep.subr.bf16.mxu0 0
        %461 = vmatpush1.bf16.msra.mxu0 0
        %462 = vmatprep.subr.bf16.mxu0 0
        %463 = vmatpush1.bf16.msra.mxu0 0
        %464 = vmatprep.mubr.bf16.mxu0 0
        %465 = vmatmul.mubr.bf16.gmra.mrb[0].mxu0 %v350
        %v466 = vpop.f32.mrb[0].mxu0
        %v467 = vadd.f32 0.0, %v466
        %v468 = vpop.f32.mrb[0].mxu0
        %v469 = vadd.f32 0.0, %v468
        %v470 = vpop.f32.mrb[0].mxu0
        %v471 = vadd.f32 0.0, %v470
        %v472 = vpop.f32.mrb[0].mxu0
        %v473 = vadd.f32 0.0, %v472
        %474 = vdwg.mxu0
        %v475 = vadd.f32 %v324, %v467
        %v476 = vadd.f32 %v325, %v469
        %v477 = vadd.f32 %v326, %v471
        %v478 = vadd.f32 %v327, %v473
        %479 = vst [vmem:[#allocation2] sm:$0xff] %v475
        %480 = vst [vmem:[#allocation2 + $0x8] sm:$0xff] %v476
        %481 = vst [vmem:[#allocation2 + $0x10] sm:$0xff] %v477
        %482 = vst [vmem:[#allocation2 + $0x18] sm:$0xff] %v478
        %p483 = scmp.eq.s32.totalorder %s21, 24
        // Predicated region
        $region78: #{discriminator_forward.5} parent=68 // pred_check
          %p484 = pneg %p483
        $region79: #{discriminator_forward.5} parent=68 // pred_check_branch
          %486 = sbr.rel (%p484) target = $region81
        $region80: #{discriminator_forward.5} parent=68 // pred_region
          %v487 = vld [vmem:[#allocation2] sm:$0xff]
          %v488 = vld [vmem:[#allocation2 + $0x8] sm:$0xff]
          %v489 = vld [vmem:[#allocation2 + $0x10] sm:$0xff]
          %v490 = vld [vmem:[#allocation2 + $0x18] sm:$0xff]
          %v491 = vld [vmem:[%s301] sm:$0x3]
          %v493 = vlaneseq
          %v494 = vshrl.u32 %v493, 7
          %v495 = vsub.s32 0, %v494
          %v496 = vrot.slane %v491, %v495
          %v497 = vlaneseq
          %v498 = vshrl.u32 %v497, 7
          %v499 = vsub.s32 1, %v498
          %v500 = vrot.slane %v491, %v499
          %v503 = vadd.f32 %v487, %v496
          %v504 = vadd.f32 %v488, %v500
          %v505 = vadd.f32 %v489, %v496
          %v506 = vadd.f32 %v490, %v500
          %v507 = vmax.f32 %v503, 0.0
          %v508 = vmax.f32 %v504, 0.0
          %v509 = vmax.f32 %v505, 0.0
          %v510 = vmax.f32 %v506, 0.0
          %511 = vst [vmem:[%s312] sm:$0xff] %v507
          %512 = vst [vmem:[%s312 + $0x8] sm:$0xff] %v508
          %513 = vst [vmem:[%s312 + $0x10] sm:$0xff] %v509
          %514 = vst [vmem:[%s312 + $0x18] sm:$0xff] %v510
        $region81: #{discriminator_forward.5} parent=68 // pred_fallthru
          _
        %s515 = smul.u32 2, %s19
        %s516 = smul.u32 2, %s20
        %p517 = scmp.lt.s32.totalorder %s515, 1
        %s518 = scalar_select %p517, %s515, 1
        %p519 = scmp.lt.s32.totalorder %s516, 1
        %s520 = scalar_select %p519, %s516, 1
        %s521 = smul.addr %s518, 2
        %s522 = sadd.s32 %s520, %s521
        %s523 = smul.addr %s522, 8
        %s524 = scalar_lea.vmem %s3, %s523
        // Predicated region
        $region82: #{discriminator_forward.5} parent=68 // pred_check
          %p525 = pneg %p135
        $region83: #{discriminator_forward.5} parent=68 // pred_check_branch
          %527 = sbr.rel (%p525) target = $region85
        $region84: #{discriminator_forward.5} parent=68 // pred_region
          %s528 = smul.u32 2, %s19
          %s529 = smul.u32 2, %s20
        $region85: #{discriminator_forward.5} parent=68 // pred_fallthru
          _
        // Predicated region
        $region86: #{discriminator_forward.5} parent=68 // pred_check
          %p530 = pneg %p135
        $region87: #{discriminator_forward.5} parent=68 // pred_check_branch
          %532 = sbr.rel (%p530) target = $region89
        $region88: #{discriminator_forward.5} parent=68 // pred_region
          %s533 = smul.u32 2, %s19
          %s534 = smul.u32 2, %s20
          %p535 = scmp.lt.s32.totalorder %s533, 1
          %s536 = scalar_select %p535, %s533, 1
          %p537 = scmp.lt.s32.totalorder %s534, 1
          %s538 = scalar_select %p537, %s534, 1
          %s539 = smul.addr %s536, 2
          %s540 = sadd.s32 %s538, %s539
          %s541 = smul.addr %s540, 8
          %s542 = scalar_lea.vmem %s3, %s541
        $region89: #{discriminator_forward.5} parent=68 // pred_fallthru
          _
      $region69: #{discriminator_forward.5} parent=5 // pred_fallthru
        _
      %p543 = scmp.le.s32.totalorder 2, %s9
      // Predicated region
      $region90: #{discriminator_forward.5} parent=5 // pred_check
        %p544 = pneg %p543
      $region91: #{discriminator_forward.5} parent=5 // pred_check_branch
        %546 = sbr.rel (%p544) target = $region93
      $region92: #{discriminator_forward.5} parent=5 // pred_region
        %s547 = ssub.s32 %s9, 2
      $region93: #{discriminator_forward.5} parent=5 // pred_fallthru
        _
    $region6: #{discriminator_forward.5} parent=1 // loop_footer
      %s13 = sadd.s32 1, %s9
    $region7: #{discriminator_forward.5} parent=1 // loop_footer_branch
      %8 = sbr.rel target = $region3
    $region8: #{discriminator_forward.5} parent=1 // loop_exit
      _

</llo_original>
